<compile_context>
chip_gen: v7x
topology: tpu7x:2x2x1
jax: 0.10.0
libtpu: 0.0.40
codegen_flags: <defaults>
</compile_context>

<pallas_src>
import functools

import jax
import jax.numpy as jnp
from jax import lax
from jax.experimental import pallas as pl
from jax.experimental.pallas import tpu as pltpu  # noqa: F401  (TPU backend)


# ----------------------------------------------------------------------------
# Slab layout (one packed weight/bias buffer, lane width 256)
# ----------------------------------------------------------------------------

def _round_up(x, m):
    return (x + m - 1) // m * m


def _slab_layout(feat, hid, emb, p1, d1):
    width = _round_up(max(3 * hid, 3 * emb, feat, hid, p1 + 1, d1 + 1), 128)
    layout = {}
    r = 0

    def add(name, rows):
        nonlocal r
        layout[name] = r
        r += _round_up(rows, 8)

    add("enc_w1", feat)      # (F, 3H)  : shared | private_src | private_tgt L1
    add("enc_w2", 3 * hid)   # (3H, 3E) : block-diagonal L2
    add("de_w1", emb)        # (E, H)
    add("de_w2", hid)        # (H, F)
    add("pr_w1", emb)        # (E, P1)
    add("dc_w1", emb)        # (E, D1)
    add("vecs", 8)           # 8 rows of biases / N=1 head weights
    layout["total_rows"] = r
    layout["width"] = width
    return layout


# ----------------------------------------------------------------------------
# Single fused Pallas kernel
# ----------------------------------------------------------------------------

def _transfernet_fused_kernel(
    src_ref, tgt_ref, label_ref, slab_ref, o_ref, *,
    batch, feat, hid, emb, p1, d1, layout,
    predict_scheme, recon_scheme, temperature):
    f32 = jnp.float32
    B, F, H, E = batch, feat, hid, emb
    L = layout

    def _mm(a, b):
        return jnp.dot(a, b, preferred_element_type=f32)

    def _row_norm(x):
        return x * lax.rsqrt(jnp.sum(x * x, axis=1, keepdims=True) + 1e-12)

    # ---- static views into the single packed weight slab --------------------
    enc_w1 = slab_ref[L["enc_w1"]:L["enc_w1"] + F, 0:3 * H]
    enc_w2 = slab_ref[L["enc_w2"]:L["enc_w2"] + 3 * H, 0:3 * E]
    de_w1 = slab_ref[L["de_w1"]:L["de_w1"] + E, 0:H]
    de_w2 = slab_ref[L["de_w2"]:L["de_w2"] + H, 0:F]
    pr_w1 = slab_ref[L["pr_w1"]:L["pr_w1"] + E, 0:p1]
    dc_w1 = slab_ref[L["dc_w1"]:L["dc_w1"] + E, 0:d1]

    vecs = slab_ref[L["vecs"]:L["vecs"] + 8, :]          # (8, W) single load
    enc_b1 = vecs[0:1, 0:3 * H]
    enc_b2 = vecs[1:2, 0:3 * E]
    de_b1 = vecs[2:3, 0:H]
    de_b2 = vecs[3:4, 0:F]
    pr_b1 = vecs[4:5, 0:p1]
    pr_b2 = vecs[4:5, p1:p1 + 1]
    dc_b1 = vecs[5:6, 0:d1]
    dc_b2 = vecs[5:6, d1:d1 + 1]
    pr_w2r = vecs[6:7, 0:p1]
    dc_w2r = vecs[7:8, 0:d1]

    # ---- concatenated batch: rows [0:B]=source, [B:2B]=target ---------------
    x_both = jnp.concatenate([src_ref[...], tgt_ref[...]], axis=0)     # (2B, F)
    row_is_src = lax.broadcasted_iota(jnp.int32, (2 * B, 1), 0) < B    # (2B, 1)

    # ---- fused encoders (shared + both private): 2 MXU passes total ---------
    h_enc = jnp.maximum(_mm(x_both, enc_w1) + enc_b1, 0.0)             # (2B, 3H)
    emb_all = _mm(h_enc, enc_w2) + enc_b2                              # (2B, 3E)
    emb_sh = emb_all[:, 0:E]                                           # (2B, E)

    # Per-row private embedding via a masked select (no row slicing / concat):
    # source rows own cols [0:E] of the private block, target rows cols [E:2E].
    rowp = lax.broadcasted_iota(jnp.int32, (2 * B, 2 * E), 0)
    colp = lax.broadcasted_iota(jnp.int32, (2 * B, 2 * E), 1)
    own_block = (rowp < B) == (colp < E)
    priv_blocked = jnp.where(own_block, emb_all[:, E:3 * E], 0.0)      # (2B, 2E)
    emb_priv = priv_blocked[:, 0:E] + priv_blocked[:, E:2 * E]         # (2B, E)

    # ---- DiffLoss (DSN orthogonality), both domains via one contraction -----
    pn = _row_norm(priv_blocked)                                       # (2B, 2E)
    sn = _row_norm(emb_sh)                                             # (2B, E)
    corr = lax.dot_general(pn, sn,
                           dimension_numbers=(((0,), (0,)), ((), ())),
                           preferred_element_type=f32)                 # (2E, E)
    # rows [0:E] = source corr block, rows [E:2E] = target corr block.
    d_loss = jnp.sum(corr * corr, keepdims=True) * (1.0 / (E * E))     # (1, 1)

    # ---- Adversarial similarity loss (GRL = identity in forward) ------------
    h_dc = jnp.maximum(_mm(emb_sh, dc_w1) + dc_b1, 0.0)                # (2B, D1)
    logits_dom = jnp.sum(h_dc * dc_w2r, axis=1, keepdims=True) + dc_b2  # (2B, 1)
    z = jnp.where(row_is_src, logits_dom, -logits_dom)   # label 0 src, 1 tgt
    simi_loss = jnp.sum(jnp.logaddexp(jnp.zeros_like(z), z),
                        keepdims=True) * (1.0 / B)                     # (1, 1)

    # ---- Predictor + MSE (source rows only; 8-row aligned slice) ------------
    if predict_scheme == "share":
        pred_emb = emb_sh
    else:  # 'all'
        pred_emb = emb_sh + emb_priv
    src_pred_emb = pred_emb[0:B, :]                                    # (B, E)
    h_pr = jnp.maximum(_mm(src_pred_emb, pr_w1) + pr_b1, 0.0)          # (B, P1)
    pred_label = jnp.sum(h_pr * pr_w2r, axis=1, keepdims=True) + pr_b2  # (B, 1)
    dmse = label_ref[...] - pred_label
    pred_loss = jnp.sum(dmse * dmse, keepdims=True) * (1.0 / B)        # (1, 1)

    # ---- Decoder (single pass over both domains) + block-masked InfoNCE -----
    if recon_scheme == "all":
        recon_emb = emb_sh + emb_priv
    else:  # 'share'
        recon_emb = emb_sh
    h_de = jnp.maximum(_mm(recon_emb, de_w1) + de_b1, 0.0)             # (2B, H)
    recon = _mm(h_de, de_w2) + de_b2                                   # (2B, F)

    qn = _row_norm(x_both)
    kn = _row_norm(recon)
    logits = lax.dot_general(qn, kn,
                             dimension_numbers=(((1,), (1,)), ((), ())),
                             preferred_element_type=f32) * (1.0 / temperature)
    rr = lax.broadcasted_iota(jnp.int32, (2 * B, 2 * B), 0)
    cc = lax.broadcasted_iota(jnp.int32, (2 * B, 2 * B), 1)
    same_dom = (rr < B) == (cc < B)
    logits_m = jnp.where(same_dom, logits, -1e30)                      # (2B, 2B)
    pos = jnp.sum(qn * kn, axis=1, keepdims=True) * (1.0 / temperature)
    m = jnp.max(logits_m, axis=1, keepdims=True)
    lse = m + jnp.log(jnp.sum(jnp.exp(logits_m - m), axis=1, keepdims=True))
    info_loss = jnp.sum(lse - pos, keepdims=True) * (1.0 / B)          # (1, 1)

    # ---- packed scalar-loss output: ONE store --------------------------------
    o_ref[...] = jnp.concatenate([d_loss, simi_loss, info_loss, pred_loss],
                                 axis=1)


# ----------------------------------------------------------------------------
# Parameter construction and ONE-TIME weight packing (outside the step)
# ----------------------------------------------------------------------------

def _init_linear(key, in_dim, out_dim, scale=0.05):
    kw, _ = jax.random.split(key)
    w = scale * jax.random.normal(kw, (in_dim, out_dim), jnp.float32)
    b = jnp.zeros((1, out_dim), jnp.float32)
    return {"w": w, "b": b}


def make_params(key, input_channel, seq_len, embedding_length):
    feat = input_channel * seq_len
    hid = 64
    keys = jax.random.split(key, 12)
    enc = lambda k0, k1: {"l1": _init_linear(k0, feat, hid),
                          "l2": _init_linear(k1, hid, embedding_length)}
    return {
        "private_source_encoder": enc(keys[0], keys[1]),
        "private_target_encoder": enc(keys[2], keys[3]),
        "shared_encoder": enc(keys[4], keys[5]),
        "predictor": {"l1": _init_linear(keys[6], embedding_length, 32),
                      "l2": _init_linear(keys[7], 32, 1)},
        "decoder": {"l1": _init_linear(keys[8], embedding_length, hid),
                    "l2": _init_linear(keys[9], hid, feat)},
        "domain_classifier": {"l1": _init_linear(keys[10], embedding_length, 16),
                              "l2": _init_linear(keys[11], 16, 1)},
    }


def pack_params(params):
    """One-time packing of all weights+biases into a single lane-dense slab."""
    ps = params["private_source_encoder"]
    pt = params["private_target_encoder"]
    sh = params["shared_encoder"]
    pr = params["predictor"]
    de = params["decoder"]
    dc = params["domain_classifier"]

    feat, hid = sh["l1"]["w"].shape
    emb = sh["l2"]["w"].shape[1]
    p1 = pr["l1"]["w"].shape[1]
    d1 = dc["l1"]["w"].shape[1]
    L = _slab_layout(feat, hid, emb, p1, d1)

    # Fused encoder L1: cols [0:H]=shared, [H:2H]=private_src, [2H:3H]=private_tgt
    enc_w1 = jnp.concatenate([sh["l1"]["w"], ps["l1"]["w"], pt["l1"]["w"]], axis=1)
    enc_b1 = jnp.concatenate([sh["l1"]["b"], ps["l1"]["b"], pt["l1"]["b"]], axis=1)
    # Fused encoder L2: block diagonal (3H, 3E)
    enc_w2 = jnp.zeros((3 * hid, 3 * emb), jnp.float32)
    enc_w2 = enc_w2.at[0:hid, 0:emb].set(sh["l2"]["w"])
    enc_w2 = enc_w2.at[hid:2 * hid, emb:2 * emb].set(ps["l2"]["w"])
    enc_w2 = enc_w2.at[2 * hid:3 * hid, 2 * emb:3 * emb].set(pt["l2"]["w"])
    enc_b2 = jnp.concatenate([sh["l2"]["b"], ps["l2"]["b"], pt["l2"]["b"]], axis=1)

    slab = jnp.zeros((L["total_rows"], L["width"]), jnp.float32)

    def put(s, name, arr):
        r0 = L[name]
        return s.at[r0:r0 + arr.shape[0], 0:arr.shape[1]].set(arr)

    slab = put(slab, "enc_w1", enc_w1)
    slab = put(slab, "enc_w2", enc_w2)
    slab = put(slab, "de_w1", de["l1"]["w"])
    slab = put(slab, "de_w2", de["l2"]["w"])
    slab = put(slab, "pr_w1", pr["l1"]["w"])
    slab = put(slab, "dc_w1", dc["l1"]["w"])
    v = L["vecs"]
    slab = slab.at[v + 0:v + 1, 0:3 * hid].set(enc_b1)
    slab = slab.at[v + 1:v + 2, 0:3 * emb].set(enc_b2)
    slab = slab.at[v + 2:v + 3, 0:hid].set(de["l1"]["b"])
    slab = slab.at[v + 3:v + 4, 0:feat].set(de["l2"]["b"])
    slab = slab.at[v + 4:v + 5, 0:p1].set(pr["l1"]["b"])
    slab = slab.at[v + 4:v + 5, p1:p1 + 1].set(pr["l2"]["b"])
    slab = slab.at[v + 5:v + 6, 0:d1].set(dc["l1"]["b"])
    slab = slab.at[v + 5:v + 6, d1:d1 + 1].set(dc["l2"]["b"])
    slab = slab.at[v + 6:v + 7, 0:p1].set(pr["l2"]["w"].T)   # (1, P1) head row
    slab = slab.at[v + 7:v + 8, 0:d1].set(dc["l2"]["w"].T)   # (1, D1) head row

    meta = dict(feat=feat, hid=hid, emb=emb, p1=p1, d1=d1, layout=L)
    return slab, meta


# ----------------------------------------------------------------------------
# Fused forward wrapper (per-step HLO = two free reshapes + one pallas_call)
# ----------------------------------------------------------------------------

def transfernet_forward(slab, source, target, source_label, *, meta, args):
    B = source.shape[0]
    src = source.reshape(B, -1)          # matches PyTorch .view(batch, -1)
    tgt = target.reshape(B, -1)

    kernel = functools.partial(
        _transfernet_fused_kernel,
        batch=B, feat=meta["feat"], hid=meta["hid"], emb=meta["emb"],
        p1=meta["p1"], d1=meta["d1"], layout=meta["layout"],
        predict_scheme=args["predict_scheme"],
        recon_scheme=args["recon_scheme"],
        temperature=args.get("temperature", 0.1))

    losses = pl.pallas_call(
        kernel,
        out_shape=jax.ShapeDtypeStruct((1, 4), jnp.float32),
        in_specs=[
            pl.BlockSpec(src.shape, lambda: (0, 0)),
            pl.BlockSpec(tgt.shape, lambda: (0, 0)),
            pl.BlockSpec(source_label.shape, lambda: (0, 0)),
            pl.BlockSpec(slab.shape, lambda: (0, 0)),
        ],
        out_specs=pl.BlockSpec((1, 4), lambda: (0, 0)),
    )(src, tgt, source_label, slab)

    return losses[0, 0], losses[0, 1], losses[0, 2], losses[0, 3]


# ----------------------------------------------------------------------------
# Main
# ----------------------------------------------------------------------------

if __name__ == "__main__":
    args = dict(input_channel=4, embedding_length=32, use_dsbn=False,
                predict_scheme="all", recon_scheme="all", temperature=0.1)
    B, C, SEQ = 8, args["input_channel"], 16

    key = jax.random.PRNGKey(0)
    k_params, k_src, k_tgt, k_lbl = jax.random.split(key, 4)

    params = make_params(k_params, C, SEQ, args["embedding_length"])
    slab, meta = pack_params(params)                # one-time packing
    slab = jax.block_until_ready(slab)

    source = jax.random.normal(k_src, (B, C, SEQ), jnp.float32)
    target = jax.random.normal(k_tgt, (B, C, SEQ), jnp.float32)
    source_label = jax.random.uniform(k_lbl, (B, 1), jnp.float32)

    fwd = jax.jit(functools.partial(transfernet_forward, meta=meta, args=args))
    losses = jax.block_until_ready(fwd(slab, source, target, source_label))

    diff_l, simi_l, info_l, pred_l = [float(x) for x in losses]
    assert all(bool(jnp.isfinite(jnp.asarray(v)))
               for v in (diff_l, simi_l, info_l, pred_l))
    print("KERNEL_OK")
</pallas_src>

<mosaic_0001>
module attributes {stable_mosaic.version = 11 : i64} {
  func.func @_transfernet_fused_kernel(%arg0: memref<8x64xf32, #tpu.memory_space<vmem>>, %arg1: memref<8x64xf32, #tpu.memory_space<vmem>>, %arg2: memref<8x1xf32, #tpu.memory_space<vmem>>, %arg3: memref<424x256xf32, #tpu.memory_space<vmem>>, %arg4: memref<1x4xf32, #tpu.memory_space<vmem>>) attributes {dimension_semantics = [], scalar_prefetch = 0 : i64, scratch_operands = 0 : i64, tpu.core_type = #tpu.core_type<tc>} {
    %c0 = arith.constant 0 : index
    %c0_0 = arith.constant 0 : index
    %0 = vector.load %arg3[%c0, %c0_0] : memref<424x256xf32, #tpu.memory_space<vmem>>, vector<64x192xf32>
    %c64 = arith.constant 64 : index
    %c0_1 = arith.constant 0 : index
    %1 = vector.load %arg3[%c64, %c0_1] : memref<424x256xf32, #tpu.memory_space<vmem>>, vector<192x96xf32>
    %c256 = arith.constant 256 : index
    %c0_2 = arith.constant 0 : index
    %2 = vector.load %arg3[%c256, %c0_2] : memref<424x256xf32, #tpu.memory_space<vmem>>, vector<32x64xf32>
    %c288 = arith.constant 288 : index
    %c0_3 = arith.constant 0 : index
    %3 = vector.load %arg3[%c288, %c0_3] : memref<424x256xf32, #tpu.memory_space<vmem>>, vector<64x64xf32>
    %c352 = arith.constant 352 : index
    %c0_4 = arith.constant 0 : index
    %4 = vector.load %arg3[%c352, %c0_4] : memref<424x256xf32, #tpu.memory_space<vmem>>, vector<32x32xf32>
    %c384 = arith.constant 384 : index
    %c0_5 = arith.constant 0 : index
    %5 = vector.load %arg3[%c384, %c0_5] : memref<424x256xf32, #tpu.memory_space<vmem>>, vector<32x16xf32>
    %c416 = arith.constant 416 : index
    %c0_6 = arith.constant 0 : index
    %6 = vector.load %arg3[%c416, %c0_6] : memref<424x256xf32, #tpu.memory_space<vmem>>, vector<8x256xf32>
    %7 = vector.extract_strided_slice %6 {offsets = [0, 0], sizes = [1, 192], strides = [1, 1]} : vector<8x256xf32> to vector<1x192xf32>
    %8 = vector.extract_strided_slice %6 {offsets = [1, 0], sizes = [1, 96], strides = [1, 1]} : vector<8x256xf32> to vector<1x96xf32>
    %9 = vector.extract_strided_slice %6 {offsets = [2, 0], sizes = [1, 64], strides = [1, 1]} : vector<8x256xf32> to vector<1x64xf32>
    %10 = vector.extract_strided_slice %6 {offsets = [3, 0], sizes = [1, 64], strides = [1, 1]} : vector<8x256xf32> to vector<1x64xf32>
    %11 = vector.extract_strided_slice %6 {offsets = [4, 0], sizes = [1, 32], strides = [1, 1]} : vector<8x256xf32> to vector<1x32xf32>
    %12 = vector.extract_strided_slice %6 {offsets = [4, 32], sizes = [1, 1], strides = [1, 1]} : vector<8x256xf32> to vector<1x1xf32>
    %13 = vector.extract_strided_slice %6 {offsets = [5, 0], sizes = [1, 16], strides = [1, 1]} : vector<8x256xf32> to vector<1x16xf32>
    %14 = vector.extract_strided_slice %6 {offsets = [5, 16], sizes = [1, 1], strides = [1, 1]} : vector<8x256xf32> to vector<1x1xf32>
    %15 = vector.extract_strided_slice %6 {offsets = [6, 0], sizes = [1, 32], strides = [1, 1]} : vector<8x256xf32> to vector<1x32xf32>
    %16 = vector.extract_strided_slice %6 {offsets = [7, 0], sizes = [1, 16], strides = [1, 1]} : vector<8x256xf32> to vector<1x16xf32>
    %c0_7 = arith.constant 0 : index
    %c0_8 = arith.constant 0 : index
    %17 = vector.load %arg0[%c0_7, %c0_8] : memref<8x64xf32, #tpu.memory_space<vmem>>, vector<8x64xf32>
    %c0_9 = arith.constant 0 : index
    %c0_10 = arith.constant 0 : index
    %18 = vector.load %arg1[%c0_9, %c0_10] : memref<8x64xf32, #tpu.memory_space<vmem>>, vector<8x64xf32>
    %19 = tpu.concatenate %17, %18 in 0 : vector<8x64xf32>, vector<8x64xf32> -> vector<16x64xf32>
    %20 = tpu.iota {dimensions = array<i32: 0>} : vector<16x1xi32>
    %c8_i32 = arith.constant 8 : i32
    %21 = vector.broadcast %c8_i32 : i32 to vector<16x1xi32>
    %22 = arith.cmpi slt, %20, %21 : vector<16x1xi32>
    %cst = arith.constant dense<0.000000e+00> : vector<16x192xf32>
    %23 = tpu.matmul %19, %0, %cst {dimension_numbers = #tpu.dot_dimension_numbers<[1], [0], [0], [1], [0, 0, 1, 1], [], []>} : vector<16x64xf32>, vector<64x192xf32>, vector<16x192xf32> -> vector<16x192xf32>
    %24 = vector.broadcast %7 : vector<1x192xf32> to vector<16x192xf32>
    %25 = arith.addf %23, %24 : vector<16x192xf32>
    %cst_11 = arith.constant 0.000000e+00 : f32
    %26 = vector.broadcast %cst_11 : f32 to vector<16x192xf32>
    %27 = arith.maximumf %25, %26 : vector<16x192xf32>
    %cst_12 = arith.constant dense<0.000000e+00> : vector<16x96xf32>
    %28 = tpu.matmul %27, %1, %cst_12 {dimension_numbers = #tpu.dot_dimension_numbers<[1], [0], [0], [1], [0, 0, 1, 1], [], []>} : vector<16x192xf32>, vector<192x96xf32>, vector<16x96xf32> -> vector<16x96xf32>
    %29 = vector.broadcast %8 : vector<1x96xf32> to vector<16x96xf32>
    %30 = arith.addf %28, %29 : vector<16x96xf32>
    %31 = vector.extract_strided_slice %30 {offsets = [0, 0], sizes = [16, 32], strides = [1, 1]} : vector<16x96xf32> to vector<16x32xf32>
    %32 = tpu.iota {dimensions = array<i32: 0>} : vector<16x64xi32>
    %33 = tpu.iota {dimensions = array<i32: 1>} : vector<16x64xi32>
    %c8_i32_13 = arith.constant 8 : i32
    %34 = vector.broadcast %c8_i32_13 : i32 to vector<16x64xi32>
    %35 = arith.cmpi slt, %32, %34 : vector<16x64xi32>
    %c32_i32 = arith.constant 32 : i32
    %36 = vector.broadcast %c32_i32 : i32 to vector<16x64xi32>
    %37 = arith.cmpi slt, %33, %36 : vector<16x64xi32>
    %38 = arith.xori %35, %37 : vector<16x64xi1>
    %cst_14 = arith.constant dense<true> : vector<16x64xi1>
    %39 = arith.xori %38, %cst_14 : vector<16x64xi1>
    %40 = vector.extract_strided_slice %30 {offsets = [0, 32], sizes = [16, 64], strides = [1, 1]} : vector<16x96xf32> to vector<16x64xf32>
    %cst_15 = arith.constant 0.000000e+00 : f32
    %41 = vector.broadcast %cst_15 : f32 to vector<16x64xf32>
    %42 = arith.select %39, %40, %41 : vector<16x64xi1>, vector<16x64xf32>
    %43 = vector.extract_strided_slice %42 {offsets = [0, 0], sizes = [16, 32], strides = [1, 1]} : vector<16x64xf32> to vector<16x32xf32>
    %44 = vector.extract_strided_slice %42 {offsets = [0, 32], sizes = [16, 32], strides = [1, 1]} : vector<16x64xf32> to vector<16x32xf32>
    %45 = arith.addf %43, %44 : vector<16x32xf32>
    %46 = arith.mulf %42, %42 : vector<16x64xf32>
    %cst_16 = arith.constant dense<0.000000e+00> : vector<16xf32>
    %47 = vector.multi_reduction <add>, %46, %cst_16 [1] : vector<16x64xf32> to vector<16xf32>
    %48 = vector.shape_cast %47 : vector<16xf32> to vector<16x1xf32>
    %cst_17 = arith.constant 9.99999996E-13 : f32
    %49 = vector.broadcast %cst_17 : f32 to vector<16x1xf32>
    %50 = arith.addf %48, %49 : vector<16x1xf32>
    %51 = math.rsqrt %50 : vector<16x1xf32>
    %52 = vector.broadcast %51 : vector<16x1xf32> to vector<16x64xf32>
    %53 = arith.mulf %42, %52 : vector<16x64xf32>
    %54 = arith.mulf %31, %31 : vector<16x32xf32>
    %cst_18 = arith.constant dense<0.000000e+00> : vector<16xf32>
    %55 = vector.multi_reduction <add>, %54, %cst_18 [1] : vector<16x32xf32> to vector<16xf32>
    %56 = vector.shape_cast %55 : vector<16xf32> to vector<16x1xf32>
    %cst_19 = arith.constant 9.99999996E-13 : f32
    %57 = vector.broadcast %cst_19 : f32 to vector<16x1xf32>
    %58 = arith.addf %56, %57 : vector<16x1xf32>
    %59 = math.rsqrt %58 : vector<16x1xf32>
    %60 = vector.broadcast %59 : vector<16x1xf32> to vector<16x32xf32>
    %61 = arith.mulf %31, %60 : vector<16x32xf32>
    %cst_20 = arith.constant dense<0.000000e+00> : vector<64x32xf32>
    %62 = tpu.matmul %53, %61, %cst_20 {dimension_numbers = #tpu.dot_dimension_numbers<[0], [0], [1], [1], [0, 1, 1, 1], [], []>} : vector<16x64xf32>, vector<16x32xf32>, vector<64x32xf32> -> vector<64x32xf32>
    %63 = arith.mulf %62, %62 : vector<64x32xf32>
    %64 = vector.shape_cast %63 : vector<64x32xf32> to vector<1x64x32xf32>
    %cst_21 = arith.constant dense<0.000000e+00> : vector<1xf32>
    %65 = vector.multi_reduction <add>, %64, %cst_21 [1, 2] : vector<1x64x32xf32> to vector<1xf32>
    %66 = vector.shape_cast %65 : vector<1xf32> to vector<1x1x1xf32>
    %67 = vector.extract %66[0, 0, 0] : f32 from vector<1x1x1xf32>
    %68 = vector.broadcast %67 : f32 to vector<1x1xf32>
    %cst_22 = arith.constant 9.765625E-4 : f32
    %69 = vector.broadcast %cst_22 : f32 to vector<1x1xf32>
    %70 = arith.mulf %68, %69 : vector<1x1xf32>
    %cst_23 = arith.constant dense<0.000000e+00> : vector<16x16xf32>
    %71 = tpu.matmul %31, %5, %cst_23 {dimension_numbers = #tpu.dot_dimension_numbers<[1], [0], [0], [1], [0, 0, 1, 1], [], []>} : vector<16x32xf32>, vector<32x16xf32>, vector<16x16xf32> -> vector<16x16xf32>
    %72 = vector.broadcast %13 : vector<1x16xf32> to vector<16x16xf32>
    %73 = arith.addf %71, %72 : vector<16x16xf32>
    %cst_24 = arith.constant 0.000000e+00 : f32
    %74 = vector.broadcast %cst_24 : f32 to vector<16x16xf32>
    %75 = arith.maximumf %73, %74 : vector<16x16xf32>
    %76 = vector.broadcast %16 : vector<1x16xf32> to vector<16x16xf32>
    %77 = arith.mulf %75, %76 : vector<16x16xf32>
    %cst_25 = arith.constant dense<0.000000e+00> : vector<16xf32>
    %78 = vector.multi_reduction <add>, %77, %cst_25 [1] : vector<16x16xf32> to vector<16xf32>
    %79 = vector.shape_cast %78 : vector<16xf32> to vector<16x1xf32>
    %80 = vector.broadcast %14 : vector<1x1xf32> to vector<16x1xf32>
    %81 = arith.addf %79, %80 : vector<16x1xf32>
    %cst_26 = arith.constant 0.000000e+00 : f32
    %82 = vector.broadcast %cst_26 : f32 to vector<16x1xf32>
    %83 = arith.subf %82, %81 : vector<16x1xf32>
    %84 = arith.select %22, %81, %83 : vector<16x1xi1>, vector<16x1xf32>
    %cst_27 = arith.constant 0.000000e+00 : f32
    %85 = vector.broadcast %cst_27 : f32 to vector<16x1xf32>
    %86 = arith.maximumf %85, %84 : vector<16x1xf32>
    %87 = arith.subf %85, %84 : vector<16x1xf32>
    %88 = arith.cmpf one, %87, %87 : vector<16x1xf32>
    %89 = arith.addf %85, %84 : vector<16x1xf32>
    %90 = math.absf %87 : vector<16x1xf32>
    %cst_28 = arith.constant 0.000000e+00 : f32
    %91 = vector.broadcast %cst_28 : f32 to vector<16x1xf32>
    %92 = arith.subf %91, %90 : vector<16x1xf32>
    %93 = math.exp %92 : vector<16x1xf32>
    %94 = math.log1p %93 : vector<16x1xf32>
    %95 = arith.addf %86, %94 : vector<16x1xf32>
    %96 = arith.select %88, %89, %95 : vector<16x1xi1>, vector<16x1xf32>
    %97 = vector.shape_cast %96 : vector<16x1xf32> to vector<1x16x1xf32>
    %cst_29 = arith.constant dense<0.000000e+00> : vector<1xf32>
    %98 = vector.multi_reduction <add>, %97, %cst_29 [1, 2] : vector<1x16x1xf32> to vector<1xf32>
    %99 = vector.shape_cast %98 : vector<1xf32> to vector<1x1x1xf32>
    %100 = vector.extract %99[0, 0, 0] : f32 from vector<1x1x1xf32>
    %101 = vector.broadcast %100 : f32 to vector<1x1xf32>
    %cst_30 = arith.constant 1.250000e-01 : f32
    %102 = vector.broadcast %cst_30 : f32 to vector<1x1xf32>
    %103 = arith.mulf %101, %102 : vector<1x1xf32>
    %104 = arith.addf %31, %45 : vector<16x32xf32>
    %105 = vector.extract_strided_slice %104 {offsets = [0, 0], sizes = [8, 32], strides = [1, 1]} : vector<16x32xf32> to vector<8x32xf32>
    %cst_31 = arith.constant dense<0.000000e+00> : vector<8x32xf32>
    %106 = tpu.matmul %105, %4, %cst_31 {dimension_numbers = #tpu.dot_dimension_numbers<[1], [0], [0], [1], [0, 0, 1, 1], [], []>} : vector<8x32xf32>, vector<32x32xf32>, vector<8x32xf32> -> vector<8x32xf32>
    %107 = vector.broadcast %11 : vector<1x32xf32> to vector<8x32xf32>
    %108 = arith.addf %106, %107 : vector<8x32xf32>
    %cst_32 = arith.constant 0.000000e+00 : f32
    %109 = vector.broadcast %cst_32 : f32 to vector<8x32xf32>
    %110 = arith.maximumf %108, %109 : vector<8x32xf32>
    %111 = vector.broadcast %15 : vector<1x32xf32> to vector<8x32xf32>
    %112 = arith.mulf %110, %111 : vector<8x32xf32>
    %cst_33 = arith.constant dense<0.000000e+00> : vector<8xf32>
    %113 = vector.multi_reduction <add>, %112, %cst_33 [1] : vector<8x32xf32> to vector<8xf32>
    %114 = vector.shape_cast %113 : vector<8xf32> to vector<8x1xf32>
    %115 = vector.broadcast %12 : vector<1x1xf32> to vector<8x1xf32>
    %116 = arith.addf %114, %115 : vector<8x1xf32>
    %c0_34 = arith.constant 0 : index
    %c0_35 = arith.constant 0 : index
    %117 = vector.load %arg2[%c0_34, %c0_35] : memref<8x1xf32, #tpu.memory_space<vmem>>, vector<8x1xf32>
    %118 = arith.subf %117, %116 : vector<8x1xf32>
    %119 = arith.mulf %118, %118 : vector<8x1xf32>
    %120 = vector.shape_cast %119 : vector<8x1xf32> to vector<1x8x1xf32>
    %cst_36 = arith.constant dense<0.000000e+00> : vector<1xf32>
    %121 = vector.multi_reduction <add>, %120, %cst_36 [1, 2] : vector<1x8x1xf32> to vector<1xf32>
    %122 = vector.shape_cast %121 : vector<1xf32> to vector<1x1x1xf32>
    %123 = vector.extract %122[0, 0, 0] : f32 from vector<1x1x1xf32>
    %124 = vector.broadcast %123 : f32 to vector<1x1xf32>
    %cst_37 = arith.constant 1.250000e-01 : f32
    %125 = vector.broadcast %cst_37 : f32 to vector<1x1xf32>
    %126 = arith.mulf %124, %125 : vector<1x1xf32>
    %127 = arith.addf %31, %45 : vector<16x32xf32>
    %cst_38 = arith.constant dense<0.000000e+00> : vector<16x64xf32>
    %128 = tpu.matmul %127, %2, %cst_38 {dimension_numbers = #tpu.dot_dimension_numbers<[1], [0], [0], [1], [0, 0, 1, 1], [], []>} : vector<16x32xf32>, vector<32x64xf32>, vector<16x64xf32> -> vector<16x64xf32>
    %129 = vector.broadcast %9 : vector<1x64xf32> to vector<16x64xf32>
    %130 = arith.addf %128, %129 : vector<16x64xf32>
    %cst_39 = arith.constant 0.000000e+00 : f32
    %131 = vector.broadcast %cst_39 : f32 to vector<16x64xf32>
    %132 = arith.maximumf %130, %131 : vector<16x64xf32>
    %cst_40 = arith.constant dense<0.000000e+00> : vector<16x64xf32>
    %133 = tpu.matmul %132, %3, %cst_40 {dimension_numbers = #tpu.dot_dimension_numbers<[1], [0], [0], [1], [0, 0, 1, 1], [], []>} : vector<16x64xf32>, vector<64x64xf32>, vector<16x64xf32> -> vector<16x64xf32>
    %134 = vector.broadcast %10 : vector<1x64xf32> to vector<16x64xf32>
    %135 = arith.addf %133, %134 : vector<16x64xf32>
    %136 = arith.mulf %19, %19 : vector<16x64xf32>
    %cst_41 = arith.constant dense<0.000000e+00> : vector<16xf32>
    %137 = vector.multi_reduction <add>, %136, %cst_41 [1] : vector<16x64xf32> to vector<16xf32>
    %138 = vector.shape_cast %137 : vector<16xf32> to vector<16x1xf32>
    %cst_42 = arith.constant 9.99999996E-13 : f32
    %139 = vector.broadcast %cst_42 : f32 to vector<16x1xf32>
    %140 = arith.addf %138, %139 : vector<16x1xf32>
    %141 = math.rsqrt %140 : vector<16x1xf32>
    %142 = vector.broadcast %141 : vector<16x1xf32> to vector<16x64xf32>
    %143 = arith.mulf %19, %142 : vector<16x64xf32>
    %144 = arith.mulf %135, %135 : vector<16x64xf32>
    %cst_43 = arith.constant dense<0.000000e+00> : vector<16xf32>
    %145 = vector.multi_reduction <add>, %144, %cst_43 [1] : vector<16x64xf32> to vector<16xf32>
    %146 = vector.shape_cast %145 : vector<16xf32> to vector<16x1xf32>
    %cst_44 = arith.constant 9.99999996E-13 : f32
    %147 = vector.broadcast %cst_44 : f32 to vector<16x1xf32>
    %148 = arith.addf %146, %147 : vector<16x1xf32>
    %149 = math.rsqrt %148 : vector<16x1xf32>
    %150 = vector.broadcast %149 : vector<16x1xf32> to vector<16x64xf32>
    %151 = arith.mulf %135, %150 : vector<16x64xf32>
    %cst_45 = arith.constant dense<0.000000e+00> : vector<16x16xf32>
    %152 = tpu.matmul %143, %151, %cst_45 {dimension_numbers = #tpu.dot_dimension_numbers<[1], [1], [0], [0], [0, 0, 1, 0], [], []>} : vector<16x64xf32>, vector<16x64xf32>, vector<16x16xf32> -> vector<16x16xf32>
    %cst_46 = arith.constant 1.000000e+01 : f32
    %153 = vector.broadcast %cst_46 : f32 to vector<16x16xf32>
    %154 = arith.mulf %152, %153 : vector<16x16xf32>
    %155 = tpu.iota {dimensions = array<i32: 0>} : vector<16x16xi32>
    %156 = tpu.iota {dimensions = array<i32: 1>} : vector<16x16xi32>
    %c8_i32_47 = arith.constant 8 : i32
    %157 = vector.broadcast %c8_i32_47 : i32 to vector<16x16xi32>
    %158 = arith.cmpi slt, %155, %157 : vector<16x16xi32>
    %c8_i32_48 = arith.constant 8 : i32
    %159 = vector.broadcast %c8_i32_48 : i32 to vector<16x16xi32>
    %160 = arith.cmpi slt, %156, %159 : vector<16x16xi32>
    %161 = arith.xori %158, %160 : vector<16x16xi1>
    %cst_49 = arith.constant dense<true> : vector<16x16xi1>
    %162 = arith.xori %161, %cst_49 : vector<16x16xi1>
    %cst_50 = arith.constant -1.000000e+30 : f32
    %163 = vector.broadcast %cst_50 : f32 to vector<16x16xf32>
    %164 = arith.select %162, %154, %163 : vector<16x16xi1>, vector<16x16xf32>
    %165 = arith.mulf %143, %151 : vector<16x64xf32>
    %cst_51 = arith.constant dense<0.000000e+00> : vector<16xf32>
    %166 = vector.multi_reduction <add>, %165, %cst_51 [1] : vector<16x64xf32> to vector<16xf32>
    %167 = vector.shape_cast %166 : vector<16xf32> to vector<16x1xf32>
    %cst_52 = arith.constant 1.000000e+01 : f32
    %168 = vector.broadcast %cst_52 : f32 to vector<16x1xf32>
    %169 = arith.mulf %167, %168 : vector<16x1xf32>
    %cst_53 = arith.constant dense<0xFF800000> : vector<16xf32>
    %170 = vector.multi_reduction <maximumf>, %164, %cst_53 [1] : vector<16x16xf32> to vector<16xf32>
    %171 = vector.shape_cast %170 : vector<16xf32> to vector<16x1xf32>
    %172 = vector.broadcast %171 : vector<16x1xf32> to vector<16x16xf32>
    %173 = arith.subf %164, %172 : vector<16x16xf32>
    %174 = math.exp %173 : vector<16x16xf32>
    %cst_54 = arith.constant dense<0.000000e+00> : vector<16xf32>
    %175 = vector.multi_reduction <add>, %174, %cst_54 [1] : vector<16x16xf32> to vector<16xf32>
    %176 = vector.shape_cast %175 : vector<16xf32> to vector<16x1xf32>
    %177 = math.log %176 : vector<16x1xf32>
    %178 = arith.addf %171, %177 : vector<16x1xf32>
    %179 = arith.subf %178, %169 : vector<16x1xf32>
    %180 = vector.shape_cast %179 : vector<16x1xf32> to vector<1x16x1xf32>
    %cst_55 = arith.constant dense<0.000000e+00> : vector<1xf32>
    %181 = vector.multi_reduction <add>, %180, %cst_55 [1, 2] : vector<1x16x1xf32> to vector<1xf32>
    %182 = vector.shape_cast %181 : vector<1xf32> to vector<1x1x1xf32>
    %183 = vector.extract %182[0, 0, 0] : f32 from vector<1x1x1xf32>
    %184 = vector.broadcast %183 : f32 to vector<1x1xf32>
    %cst_56 = arith.constant 1.250000e-01 : f32
    %185 = vector.broadcast %cst_56 : f32 to vector<1x1xf32>
    %186 = arith.mulf %184, %185 : vector<1x1xf32>
    %187 = tpu.concatenate %70, %103, %186, %126 in 1 : vector<1x1xf32>, vector<1x1xf32>, vector<1x1xf32>, vector<1x1xf32> -> vector<1x4xf32>
    %c0_57 = arith.constant 0 : index
    %c0_58 = arith.constant 0 : index
    %188 = vector.load %arg4[%c0_57, %c0_58] : memref<1x4xf32, #tpu.memory_space<vmem>>, vector<1x4xf32>
    tpu.vector_store %arg4[%c0_57, %c0_58], %187 {strides = array<i32>} : memref<1x4xf32, #tpu.memory_space<vmem>>, vector<1x4xf32>,
    return
  }
}

</mosaic_0001>

<llo_original>
// kernel: transfernet_forward.1
$region0: #{transfernet_forward.1}
  #allocation0 [shape = 'u32[]', space=smem, size = 0x4, offset = 0x4, fixed_abs, tag = 'smem constant byte address 0x4 - core index']
  #allocation1 [shape = 'u32[144,128]{1,0:T(1,128)}', space=vmem, size = 0x12000, scoped, tag = 'internal scratch']
  %s0 = inlined_call_operand.vmem [shape: f32[8,64], index: 0, kind: input, shape index: {}]
  %s1 = inlined_call_operand.vmem [shape: f32[8,64], index: 1, kind: input, shape index: {}]
  %s2 = inlined_call_operand.vmem [shape: f32[8,1], index: 2, kind: input, shape index: {}]
  %s3 = inlined_call_operand.hbm [shape: f32[424,256], index: 3, kind: input, shape index: {}]
  %s4 = inlined_call_operand.vmem [shape: f32[1,4], index: 4, kind: output, shape index: {}]
  %s5 = sld [smem:[#allocation0]]
  $region30: #{transfernet_forward.1} parent=0
    _
  %s7 = ssub.s32 1, %s5
  %s8 = scalar_select 0, %s7, %s5
  $region1: #{transfernet_forward.1} parent=0
    #allocation2 [shape = 'u8[434176]{0}', space=vmem, size = 0x6a000, scoped, tag = 'input window, operand 3, single buffered']
    #allocation3 [shape = 's32[1]{0}', space=sflag, size = 0x4, scoped, tag = 'scoped memory for transfernet_forward.1']
    %9 = vsyncpa [#allocation3], 0
    // Predicated region
    $region2: #{transfernet_forward.1} parent=1 // pred_check
      _
    $region3: #{transfernet_forward.1} parent=1 // pred_check_branch
      %11 = sbr.rel (0) target = $region5
    $region4: #{transfernet_forward.1} parent=1 // pred_region
      _
    $region5: #{transfernet_forward.1} parent=1 // pred_fallthru
      _
    // Predicated region
    $region6: #{transfernet_forward.1} parent=1 // pred_check
      _
    $region7: #{transfernet_forward.1} parent=1 // pred_check_branch
      %13 = sbr.rel (0) target = $region9
    $region8: #{transfernet_forward.1} parent=1 // pred_region
      _
    $region9: #{transfernet_forward.1} parent=1 // pred_fallthru
      _
    // Predicated region
    $region10: #{transfernet_forward.1} parent=1 // pred_check
      _
    $region11: #{transfernet_forward.1} parent=1 // pred_check_branch
      %15 = sbr.rel (0) target = $region13
    $region12: #{transfernet_forward.1} parent=1 // pred_region
      _
    $region13: #{transfernet_forward.1} parent=1 // pred_fallthru
      _
    // Predicated region
    $region14: #{transfernet_forward.1} parent=1 // pred_check
      _
    $region15: #{transfernet_forward.1} parent=1 // pred_check_branch
      %17 = sbr.rel (0) target = $region17
    $region16: #{transfernet_forward.1} parent=1 // pred_region
      %s19 = ssub.s32 13568, 13568
      %20 = vsyncadd [#allocation3], %s19
      %s21 = sshll.u32 [#allocation2], 4
      %s22 = int_to_ptr.vmem [resolvable:$true] %s21
      %27 = dma.hbm_to_vmem [thread:$0]  %s3, 13568, %s22, [#allocation3], 256, 256, 16
    $region17: #{transfernet_forward.1} parent=1 // pred_fallthru
      _
    // Predicated region
    $region18: #{transfernet_forward.1} parent=1 // pred_check
      _
    $region19: #{transfernet_forward.1} parent=1 // pred_check_branch
      %29 = sbr.rel (0) target = $region21
    $region20: #{transfernet_forward.1} parent=1 // pred_region
      %30 = dma.done [#allocation3], 13568
    $region21: #{transfernet_forward.1} parent=1 // pred_fallthru
      _
    %v31 = vld [vmem:[#allocation2] sm:$0xff]
    %v32 = vld [vmem:[#allocation2 + $0x8] sm:$0xff]
    %v33 = vld [vmem:[#allocation2 + $0x10] sm:$0xff]
    %v34 = vld [vmem:[#allocation2 + $0x18] sm:$0xff]
    %v35 = vld [vmem:[#allocation2 + $0x20] sm:$0xff]
    %v36 = vld [vmem:[#allocation2 + $0x28] sm:$0xff]
    %v37 = vld [vmem:[#allocation2 + $0x30] sm:$0xff]
    %v38 = vld [vmem:[#allocation2 + $0x38] sm:$0xff]
    %v39 = vld [vmem:[#allocation2 + $0x40] sm:$0xff]
    %v40 = vld [vmem:[#allocation2 + $0x48] sm:$0xff]
    %v41 = vld [vmem:[#allocation2 + $0x50] sm:$0xff]
    %v42 = vld [vmem:[#allocation2 + $0x58] sm:$0xff]
    %v43 = vld [vmem:[#allocation2 + $0x60] sm:$0xff]
    %v44 = vld [vmem:[#allocation2 + $0x68] sm:$0xff]
    %v45 = vld [vmem:[#allocation2 + $0x70] sm:$0xff]
    %v46 = vld [vmem:[#allocation2 + $0x78] sm:$0xff]
    %v47 = vld [vmem:[#allocation2 + $0x80] sm:$0xff]
    %v48 = vld [vmem:[#allocation2 + $0x90] sm:$0xff]
    %v49 = vld [vmem:[#allocation2 + $0xa0] sm:$0xff]
    %v50 = vld [vmem:[#allocation2 + $0xb0] sm:$0xff]
    %v51 = vld [vmem:[#allocation2 + $0xc0] sm:$0xff]
    %v52 = vld [vmem:[#allocation2 + $0xd0] sm:$0xff]
    %v53 = vld [vmem:[#allocation2 + $0xe0] sm:$0xff]
    %v54 = vld [vmem:[#allocation2 + $0xf0] sm:$0xff]
    %v55 = vld [vmem:[#allocation2 + $0x100] sm:$0xff]
    %v56 = vld [vmem:[#allocation2 + $0x110] sm:$0xff]
    %v57 = vld [vmem:[#allocation2 + $0x120] sm:$0xff]
    %v58 = vld [vmem:[#allocation2 + $0x130] sm:$0xff]
    %v59 = vld [vmem:[#allocation2 + $0x140] sm:$0xff]
    %v60 = vld [vmem:[#allocation2 + $0x150] sm:$0xff]
    %v61 = vld [vmem:[#allocation2 + $0x160] sm:$0xff]
    %v62 = vld [vmem:[#allocation2 + $0x170] sm:$0xff]
    %v63 = vld [vmem:[#allocation2 + $0x180] sm:$0xff]
    %v64 = vld [vmem:[#allocation2 + $0x190] sm:$0xff]
    %v65 = vld [vmem:[#allocation2 + $0x1a0] sm:$0xff]
    %v66 = vld [vmem:[#allocation2 + $0x1b0] sm:$0xff]
    %v67 = vld [vmem:[#allocation2 + $0x1c0] sm:$0xff]
    %v68 = vld [vmem:[#allocation2 + $0x1d0] sm:$0xff]
    %v69 = vld [vmem:[#allocation2 + $0x1e0] sm:$0xff]
    %v70 = vld [vmem:[#allocation2 + $0x1f0] sm:$0xff]
    %v71 = vld [vmem:[#allocation2 + $0x200] sm:$0xff]
    %v72 = vld [vmem:[#allocation2 + $0x210] sm:$0xff]
    %v73 = vld [vmem:[#allocation2 + $0x220] sm:$0xff]
    %v74 = vld [vmem:[#allocation2 + $0x230] sm:$0xff]
    %v75 = vld [vmem:[#allocation2 + $0x240] sm:$0xff]
    %v76 = vld [vmem:[#allocation2 + $0x250] sm:$0xff]
    %v77 = vld [vmem:[#allocation2 + $0x260] sm:$0xff]
    %v78 = vld [vmem:[#allocation2 + $0x270] sm:$0xff]
    %v79 = vld [vmem:[#allocation2 + $0x280] sm:$0xff]
    %v80 = vld [vmem:[#allocation2 + $0x290] sm:$0xff]
    %v81 = vld [vmem:[#allocation2 + $0x2a0] sm:$0xff]
    %v82 = vld [vmem:[#allocation2 + $0x2b0] sm:$0xff]
    %v83 = vld [vmem:[#allocation2 + $0x2c0] sm:$0xff]
    %v84 = vld [vmem:[#allocation2 + $0x2d0] sm:$0xff]
    %v85 = vld [vmem:[#allocation2 + $0x2e0] sm:$0xff]
    %v86 = vld [vmem:[#allocation2 + $0x2f0] sm:$0xff]
    %v87 = vld [vmem:[#allocation2 + $0x300] sm:$0xff]
    %v88 = vld [vmem:[#allocation2 + $0x310] sm:$0xff]
    %v89 = vld [vmem:[#allocation2 + $0x320] sm:$0xff]
    %v90 = vld [vmem:[#allocation2 + $0x330] sm:$0xff]
    %v91 = vld [vmem:[#allocation2 + $0x340] sm:$0xff]
    %v92 = vld [vmem:[#allocation2 + $0x348] sm:$0xff]
    %v93 = vld [vmem:[%s0] sm:$0xff]
    %v94 = vld [vmem:[%s1] sm:$0xff]
    %v95 = vlaneseq
    %v96 = vshrl.u32 %v95, 7
    %v97 = vadd.s32 %v96, 8
    %vm98 = vcmp.lt.s32.totalorder %v96, 8
    %vm99 = vcmp.lt.s32.totalorder %v97, 8
    %v100 = vlaneseq
    %v101 = vshrl.u32 %v100, 7
    %v102 = vsub.s32 0, %v101
    %v103 = vrot.slane %v91, %v102
    %v104 = vlaneseq
    %v105 = vshrl.u32 %v104, 7
    %v106 = vsub.s32 0, %v105
    %v107 = vrot.slane %v92, %v106
    %vm108 = vcmask 523264
    %v110 = vsel %vm108, %v93, 0
    %v113 = vsel %vm108, %v94, 0
    %115 = vmatprep.subr.mxu0 %v32
    %116 = vmatpush1.msra.mxu0 %v31
    %117 = vmatprep.subr.mxu0 %v34
    %118 = vmatpush1.msra.mxu0 %v33
    %119 = vmatprep.subr.mxu0 %v36
    %120 = vmatpush1.msra.mxu0 %v35
    %121 = vmatprep.subr.mxu0 %v38
    %122 = vmatpush1.msra.mxu0 %v37
    %123 = vmatprep.subr.mxu0 %v40
    %124 = vmatpush1.msra.mxu0 %v39
    %125 = vmatprep.subr.mxu0 %v42
    %126 = vmatpush1.msra.mxu0 %v41
    %127 = vmatprep.subr.mxu0 %v44
    %128 = vmatpush1.msra.mxu0 %v43
    %129 = vmatprep.subr.mxu0 %v46
    %130 = vmatpush1.msra.mxu0 %v45
    %131 = vmatprep.subr.mxu0 0.0
    %132 = vmatpush1.msra.mxu0 0.0
    %133 = vmatprep.subr.mxu0 0.0
    %134 = vmatpush1.msra.mxu0 0.0
    %135 = vmatprep.subr.mxu0 0.0
    %136 = vmatpush1.msra.mxu0 0.0
    %137 = vmatprep.subr.mxu0 0.0
    %138 = vmatpush1.msra.mxu0 0.0
    %139 = vmatprep.subr.mxu0 0.0
    %140 = vmatpush1.msra.mxu0 0.0
    %141 = vmatprep.subr.mxu0 0.0
    %142 = vmatpush1.msra.mxu0 0.0
    %143 = vmatprep.subr.mxu0 0.0
    %144 = vmatpush1.msra.mxu0 0.0
    %145 = vmatprep.subr.mxu0 0.0
    %146 = vmatpush1.msra.mxu0 0.0
    %147 = vmatprep.subr.mxu0 0.0
    %148 = vmatpush1.msra.mxu0 0.0
    %149 = vmatprep.subr.mxu0 0.0
    %150 = vmatpush1.msra.mxu0 0.0
    %151 = vmatprep.subr.mxu0 0.0
    %152 = vmatpush1.msra.mxu0 0.0
    %153 = vmatprep.subr.mxu0 0.0
    %154 = vmatpush1.msra.mxu0 0.0
    %155 = vmatprep.subr.mxu0 0.0
    %156 = vmatpush1.msra.mxu0 0.0
    %157 = vmatprep.subr.mxu0 0.0
    %158 = vmatpush1.msra.mxu0 0.0
    %159 = vmatprep.subr.mxu0 0.0
    %160 = vmatpush1.msra.mxu0 0.0
    %161 = vmatprep.subr.mxu0 0.0
    %162 = vmatpush1.msra.mxu0 0.0
    %163 = vmatprep.subr.mxu0 0.0
    %164 = vmatpush1.msra.mxu0 0.0
    %165 = vmatprep.subr.mxu0 0.0
    %166 = vmatpush1.msra.mxu0 0.0
    %167 = vmatprep.subr.mxu0 0.0
    %168 = vmatpush1.msra.mxu0 0.0
    %169 = vmatprep.subr.mxu0 0.0
    %170 = vmatpush1.msra.mxu0 0.0
    %171 = vmatprep.subr.mxu0 0.0
    %172 = vmatpush1.msra.mxu0 0.0
    %173 = vmatprep.subr.mxu0 0.0
    %174 = vmatpush1.msra.mxu0 0.0
    %175 = vmatprep.subr.mxu0 0.0
    %176 = vmatpush1.msra.mxu0 0.0
    %177 = vmatprep.subr.mxu0 0.0
    %178 = vmatpush1.msra.mxu0 0.0
    %179 = vmatprep.mubr.f32.mxu0 0.0
    %180 = vmatmul.mubr.f32.gmra.mrb[0].mxu0 %v110
    %v181 = vpop.f32.mrb[0].mxu0
    %v182 = vadd.f32 %v103, %v181
    %v183 = vpop.f32.mrb[0].mxu0
    %v184 = vadd.f32 %v107, %v183
    %185 = vmatprep.mubr.f32.mxu0 0.0
    %186 = vmatmul.mubr.f32.gmra.mrb[0].mxu0 %v113
    %v187 = vpop.f32.mrb[0].mxu0
    %v188 = vadd.f32 %v103, %v187
    %v189 = vpop.f32.mrb[0].mxu0
    %v190 = vadd.f32 %v107, %v189
    %191 = vdwg.mxu0
    %v192 = vmax.f32 %v182, 0.0
    %v193 = vmax.f32 %v184, 0.0
    %v194 = vmax.f32 %v188, 0.0
    %v195 = vmax.f32 %v190, 0.0
    %v196 = vlaneseq
    %v197 = vshrl.u32 %v196, 7
    %v198 = vsub.s32 1, %v197
    %v199 = vrot.slane %v91, %v198
    %v201 = vsel %vm108, %v193, 0
    %v204 = vsel %vm108, %v195, 0
    %206 = vmatprep.subr.mxu0 0.0
    %207 = vmatpush1.msra.mxu0 %v47
    %208 = vmatprep.subr.mxu0 0.0
    %209 = vmatpush1.msra.mxu0 %v48
    %210 = vmatprep.subr.mxu0 0.0
    %211 = vmatpush1.msra.mxu0 %v49
    %212 = vmatprep.subr.mxu0 0.0
    %213 = vmatpush1.msra.mxu0 %v50
    %214 = vmatprep.subr.mxu0 0.0
    %215 = vmatpush1.msra.mxu0 %v51
    %216 = vmatprep.subr.mxu0 0.0
    %217 = vmatpush1.msra.mxu0 %v52
    %218 = vmatprep.subr.mxu0 0.0
    %219 = vmatpush1.msra.mxu0 %v53
    %220 = vmatprep.subr.mxu0 0.0
    %221 = vmatpush1.msra.mxu0 %v54
    %222 = vmatprep.subr.mxu0 0.0
    %223 = vmatpush1.msra.mxu0 %v55
    %224 = vmatprep.subr.mxu0 0.0
    %225 = vmatpush1.msra.mxu0 %v56
    %226 = vmatprep.subr.mxu0 0.0
    %227 = vmatpush1.msra.mxu0 %v57
    %228 = vmatprep.subr.mxu0 0.0
    %229 = vmatpush1.msra.mxu0 %v58
    %230 = vmatprep.subr.mxu0 0.0
    %231 = vmatpush1.msra.mxu0 %v59
    %232 = vmatprep.subr.mxu0 0.0
    %233 = vmatpush1.msra.mxu0 %v60
    %234 = vmatprep.subr.mxu0 0.0
    %235 = vmatpush1.msra.mxu0 %v61
    %236 = vmatprep.subr.mxu0 0.0
    %237 = vmatpush1.msra.mxu0 %v62
    %238 = vmatprep.subr.mxu0 0.0
    %239 = vmatpush1.msra.mxu0 %v63
    %240 = vmatprep.subr.mxu0 0.0
    %241 = vmatpush1.msra.mxu0 %v64
    %242 = vmatprep.subr.mxu0 0.0
    %243 = vmatpush1.msra.mxu0 %v65
    %244 = vmatprep.subr.mxu0 0.0
    %245 = vmatpush1.msra.mxu0 %v66
    %246 = vmatprep.subr.mxu0 0.0
    %247 = vmatpush1.msra.mxu0 %v67
    %248 = vmatprep.subr.mxu0 0.0
    %249 = vmatpush1.msra.mxu0 %v68
    %250 = vmatprep.subr.mxu0 0.0
    %251 = vmatpush1.msra.mxu0 %v69
    %252 = vmatprep.subr.mxu0 0.0
    %253 = vmatpush1.msra.mxu0 %v70
    %254 = vmatprep.subr.mxu0 0.0
    %255 = vmatpush1.msra.mxu0 0.0
    %256 = vmatprep.subr.mxu0 0.0
    %257 = vmatpush1.msra.mxu0 0.0
    %258 = vmatprep.subr.mxu0 0.0
    %259 = vmatpush1.msra.mxu0 0.0
    %260 = vmatprep.subr.mxu0 0.0
    %261 = vmatpush1.msra.mxu0 0.0
    %262 = vmatprep.subr.mxu0 0.0
    %263 = vmatpush1.msra.mxu0 0.0
    %264 = vmatprep.subr.mxu0 0.0
    %265 = vmatpush1.msra.mxu0 0.0
    %266 = vmatprep.subr.mxu0 0.0
    %267 = vmatpush1.msra.mxu0 0.0
    %268 = vmatprep.subr.mxu0 0.0
    %269 = vmatpush1.msra.mxu0 0.0
    %270 = vmatprep.mubr.f32.mxu0 %v201
    %271 = vmatmul.mubr.f32.gmra.mrb[0].mxu0 %v192
    %v272 = vpop.f32.mrb[0].mxu0
    %v273 = vadd.f32 %v199, %v272
    %v274 = vpop.f32.mrb[0].mxu0
    %275 = vmatprep.mubr.f32.mxu0 %v204
    %276 = vmatmul.mubr.f32.gmra.mrb[0].mxu0 %v194
    %v277 = vpop.f32.mrb[0].mxu0
    %v278 = vadd.f32 %v199, %v277
    %v279 = vpop.f32.mrb[0].mxu0
    %280 = vdwg.mxu0
    %v281 = vlaneseq
    %v282 = vand.u32 %v281, 127
    %vm283 = vcmp.lt.s32.totalorder %v282, 32
    %vm284 = vmxor %vm98, %vm283
    %vm285 = vmxor %vm99, %vm283
    %vm286 = vmxor %vm284, 1
    %vm287 = vmxor %vm285, 1
    %290 = vrot.lane.b32.xlu0 %v273, 96
    %v291 = vpop.permute.xlu0 %290
    %292 = vrot.lane.b32.xlu0 %v278, 96
    %v293 = vpop.permute.xlu0 %292
    %v296 = vsel %vm286, %v291, 0.0
    %v297 = vsel %vm287, %v293, 0.0
    %300 = vrot.lane.b32.xlu0 %v296, 96
    %v301 = vpop.permute.xlu0 %300
    %302 = vrot.lane.b32.xlu0 %v297, 96
    %v303 = vpop.permute.xlu0 %302
    %v306 = vadd.f32 %v296, %v301
    %v307 = vadd.f32 %v297, %v303
    %v308 = vmul.f32 %v296, %v296
    %v309 = vmul.f32 %v297, %v297
    %v310 = vsel %vm108, %v308, 0.0
    %311 = vadd.xlane.f32.xlu0 %v310
    %v312 = vpop.xlane.xlu0 %311
    %v313 = vsel %vm108, %v309, 0.0
    %314 = vadd.xlane.f32.xlu0 %v313
    %v315 = vpop.xlane.xlu0 %314
    %v316 = vadd.f32 %v312, 1e-12
    %v317 = vadd.f32 %v315, 1e-12
    %v318 = vrsqrt.pop %v316
    %v319 = vrsqrt.pop %v317
    %v320 = vmul.f32 %v296, %v318
    %v321 = vmul.f32 %v297, %v319
    %v322 = vmul.f32 %v273, %v273
    %v323 = vmul.f32 %v278, %v278
    %vm324 = vcmask 261120
    %v325 = vsel %vm324, %v322, 0.0
    %326 = vadd.xlane.f32.xlu0 %v325
    %v327 = vpop.xlane.xlu0 %326
    %v328 = vsel %vm324, %v323, 0.0
    %329 = vadd.xlane.f32.xlu0 %v328
    %v330 = vpop.xlane.xlu0 %329
    %v331 = vadd.f32 %v327, 1e-12
    %v332 = vadd.f32 %v330, 1e-12
    %v333 = vrsqrt.pop %v331
    %v334 = vrsqrt.pop %v332
    %v335 = vmul.f32 %v273, %v333
    %v336 = vmul.f32 %v278, %v334
    %337 = vxpose.xlu0.b32.start [1/16] %v320, 128
    %338 = vxpose.xlu0.b32.cont [2/16] %v321, 128
    %339 = vxpose.xlu0.b32.cont [3/16] 0.0, 128
    %340 = vxpose.xlu0.b32.cont [4/16] 0.0, 128
    %341 = vxpose.xlu0.b32.cont [5/16] 0.0, 128
    %342 = vxpose.xlu0.b32.cont [6/16] 0.0, 128
    %343 = vxpose.xlu0.b32.cont [7/16] 0.0, 128
    %344 = vxpose.xlu0.b32.cont [8/16] 0.0, 128
    %345 = vxpose.xlu0.b32.cont [9/16] 0.0, 128
    %346 = vxpose.xlu0.b32.cont [10/16] 0.0, 128
    %347 = vxpose.xlu0.b32.cont [11/16] 0.0, 128
    %348 = vxpose.xlu0.b32.cont [12/16] 0.0, 128
    %349 = vxpose.xlu0.b32.cont [13/16] 0.0, 128
    %350 = vxpose.xlu0.b32.cont [14/16] 0.0, 128
    %351 = vxpose.xlu0.b32.cont [15/16] 0.0, 128
    %352 = vxpose.xlu0.b32.end [16/16] 0.0, 128
    %v353 = vpop.trf.xlu0
    %v354 = vpop.trf.xlu0
    %v355 = vpop.trf.xlu0
    %v356 = vpop.trf.xlu0
    %v357 = vpop.trf.xlu0
    %v358 = vpop.trf.xlu0
    %v359 = vpop.trf.xlu0
    %v360 = vpop.trf.xlu0
    %v361 = vpop.trf.xlu0
    %v362 = vpop.trf.xlu0
    %v363 = vpop.trf.xlu0
    %v364 = vpop.trf.xlu0
    %v365 = vpop.trf.xlu0
    %v366 = vpop.trf.xlu0
    %v367 = vpop.trf.xlu0
    %v368 = vpop.trf.xlu0
    %vm369 = vcmask 130048
    %v371 = vsel %vm369, %v353, 0
    %v374 = vsel %vm369, %v354, 0
    %v377 = vsel %vm369, %v355, 0
    %v380 = vsel %vm369, %v356, 0
    %v383 = vsel %vm369, %v357, 0
    %v386 = vsel %vm369, %v358, 0
    %v389 = vsel %vm369, %v359, 0
    %v392 = vsel %vm369, %v360, 0
    %394 = vmatprep.subr.mxu0 0.0
    %395 = vmatpush1.msra.mxu0 %v335
    %396 = vmatprep.subr.mxu0 0.0
    %397 = vmatpush1.msra.mxu0 %v336
    %398 = vmatprep.subr.mxu0 0.0
    %399 = vmatpush1.msra.mxu0 0.0
    %400 = vmatprep.subr.mxu0 0.0
    %401 = vmatpush1.msra.mxu0 0.0
    %402 = vmatprep.subr.mxu0 0.0
    %403 = vmatpush1.msra.mxu0 0.0
    %404 = vmatprep.subr.mxu0 0.0
    %405 = vmatpush1.msra.mxu0 0.0
    %406 = vmatprep.subr.mxu0 0.0
    %407 = vmatpush1.msra.mxu0 0.0
    %408 = vmatprep.subr.mxu0 0.0
    %409 = vmatpush1.msra.mxu0 0.0
    %410 = vmatprep.subr.mxu0 0.0
    %411 = vmatpush1.msra.mxu0 0.0
    %412 = vmatprep.subr.mxu0 0.0
    %413 = vmatpush1.msra.mxu0 0.0
    %414 = vmatprep.subr.mxu0 0.0
    %415 = vmatpush1.msra.mxu0 0.0
    %416 = vmatprep.subr.mxu0 0.0
    %417 = vmatpush1.msra.mxu0 0.0
    %418 = vmatprep.subr.mxu0 0.0
    %419 = vmatpush1.msra.mxu0 0.0
    %420 = vmatprep.subr.mxu0 0.0
    %421 = vmatpush1.msra.mxu0 0.0
    %422 = vmatprep.subr.mxu0 0.0
    %423 = vmatpush1.msra.mxu0 0.0
    %424 = vmatprep.subr.mxu0 0.0
    %425 = vmatpush1.msra.mxu0 0.0
    %426 = vmatprep.subr.mxu0 0.0
    %427 = vmatpush1.msra.mxu0 0.0
    %428 = vmatprep.subr.mxu0 0.0
    %429 = vmatpush1.msra.mxu0 0.0
    %430 = vmatprep.subr.mxu0 0.0
    %431 = vmatpush1.msra.mxu0 0.0
    %432 = vmatprep.subr.mxu0 0.0
    %433 = vmatpush1.msra.mxu0 0.0
    %434 = vmatprep.subr.mxu0 0.0
    %435 = vmatpush1.msra.mxu0 0.0
    %436 = vmatprep.subr.mxu0 0.0
    %437 = vmatpush1.msra.mxu0 0.0
    %438 = vmatprep.subr.mxu0 0.0
    %439 = vmatpush1.msra.mxu0 0.0
    %440 = vmatprep.subr.mxu0 0.0
    %441 = vmatpush1.msra.mxu0 0.0
    %442 = vmatprep.subr.mxu0 0.0
    %443 = vmatpush1.msra.mxu0 0.0
    %444 = vmatprep.subr.mxu0 0.0
    %445 = vmatpush1.msra.mxu0 0.0
    %446 = vmatprep.subr.mxu0 0.0
    %447 = vmatpush1.msra.mxu0 0.0
    %448 = vmatprep.subr.mxu0 0.0
    %449 = vmatpush1.msra.mxu0 0.0
    %450 = vmatprep.subr.mxu0 0.0
    %451 = vmatpush1.msra.mxu0 0.0
    %452 = vmatprep.subr.mxu0 0.0
    %453 = vmatpush1.msra.mxu0 0.0
    %454 = vmatprep.subr.mxu0 0.0
    %455 = vmatpush1.msra.mxu0 0.0
    %456 = vmatprep.subr.mxu0 0.0
    %457 = vmatpush1.msra.mxu0 0.0
    %458 = vmatprep.mubr.f32.mxu0 0.0
    %459 = vmatmul.mubr.f32.gmra.mrb[0].mxu0 %v371
    %v460 = vpop.f32.mrb[0].mxu0
    %v461 = vadd.f32 0.0, %v460
    %v462 = vpop.f32.mrb[0].mxu0
    %463 = vmatprep.mubr.f32.mxu0 0.0
    %464 = vmatmul.mubr.f32.gmra.mrb[0].mxu0 %v374
    %v465 = vpop.f32.mrb[0].mxu0
    %v466 = vadd.f32 0.0, %v465
    %v467 = vpop.f32.mrb[0].mxu0
    %468 = vmatprep.mubr.f32.mxu0 0.0
    %469 = vmatmul.mubr.f32.gmra.mrb[0].mxu0 %v377
    %v470 = vpop.f32.mrb[0].mxu0
    %v471 = vadd.f32 0.0, %v470
    %v472 = vpop.f32.mrb[0].mxu0
    %473 = vmatprep.mubr.f32.mxu0 0.0
    %474 = vmatmul.mubr.f32.gmra.mrb[0].mxu0 %v380
    %v475 = vpop.f32.mrb[0].mxu0
    %v476 = vadd.f32 0.0, %v475
    %v477 = vpop.f32.mrb[0].mxu0
    %478 = vmatprep.mubr.f32.mxu0 0.0
    %479 = vmatmul.mubr.f32.gmra.mrb[0].mxu0 %v383
    %v480 = vpop.f32.mrb[0].mxu0
    %v481 = vadd.f32 0.0, %v480
    %v482 = vpop.f32.mrb[0].mxu0
    %483 = vmatprep.mubr.f32.mxu0 0.0
    %484 = vmatmul.mubr.f32.gmra.mrb[0].mxu0 %v386
    %v485 = vpop.f32.mrb[0].mxu0
    %v486 = vadd.f32 0.0, %v485
    %v487 = vpop.f32.mrb[0].mxu0
    %488 = vmatprep.mubr.f32.mxu0 0.0
    %489 = vmatmul.mubr.f32.gmra.mrb[0].mxu0 %v389
    %v490 = vpop.f32.mrb[0].mxu0
    %v491 = vadd.f32 0.0, %v490
    %v492 = vpop.f32.mrb[0].mxu0
    %493 = vmatprep.mubr.f32.mxu0 0.0
    %494 = vmatmul.mubr.f32.gmra.mrb[0].mxu0 %v392
    %v495 = vpop.f32.mrb[0].mxu0
    %v496 = vadd.f32 0.0, %v495
    %v497 = vpop.f32.mrb[0].mxu0
    %498 = vdwg.mxu0
    %v499 = vmul.f32 %v461, %v461
    %v500 = vmul.f32 %v466, %v466
    %v501 = vmul.f32 %v471, %v471
    %v502 = vmul.f32 %v476, %v476
    %v503 = vmul.f32 %v481, %v481
    %v504 = vmul.f32 %v486, %v486
    %v505 = vmul.f32 %v491, %v491
    %v506 = vmul.f32 %v496, %v496
    %v507 = vsel %vm324, %v499, 0.0
    %v508 = vsel %vm324, %v500, 0.0
    %v509 = vadd.f32 %v507, %v508
    %v510 = vsel %vm324, %v501, 0.0
    %v511 = vadd.f32 %v509, %v510
    %v512 = vsel %vm324, %v502, 0.0
    %v513 = vadd.f32 %v511, %v512
    %v514 = vsel %vm324, %v503, 0.0
    %v515 = vadd.f32 %v513, %v514
    %v516 = vsel %vm324, %v504, 0.0
    %v517 = vadd.f32 %v515, %v516
    %v518 = vsel %vm324, %v505, 0.0
    %v519 = vadd.f32 %v517, %v518
    %v520 = vsel %vm324, %v506, 0.0
    %v521 = vadd.f32 %v519, %v520
    %522 = vadd.xlane.f32.xlu0 %v521
    %v523 = vpop.xlane.xlu0 %522
    %v524 = vrot.slane %v523, 4
    %v525 = vadd.f32 %v523, %v524
    %v526 = vrot.slane %v525, 2
    %v527 = vadd.f32 %v525, %v526
    %v528 = vrot.slane %v527, 1
    %v529 = vadd.f32 %v527, %v528
    %s530 = vtos %v529
    %v531 = vstv %s530
    %v532 = vmul.f32 %v531, 0.0009765625
    %v533 = vlaneseq
    %v534 = vshrl.u32 %v533, 7
    %v535 = vsub.s32 5, %v534
    %v536 = vrot.slane %v91, %v535
    %v537 = vsel %vm324, %v273, 0
    %v539 = vsel %vm324, %v278, 0
    %541 = vmatprep.subr.mxu0 0.0
    %542 = vmatpush1.msra.mxu0 %v87
    %543 = vmatprep.subr.mxu0 0.0
    %544 = vmatpush1.msra.mxu0 %v88
    %545 = vmatprep.subr.mxu0 0.0
    %546 = vmatpush1.msra.mxu0 %v89
    %547 = vmatprep.subr.mxu0 0.0
    %548 = vmatpush1.msra.mxu0 %v90
    %549 = vmatprep.subr.mxu0 0.0
    %550 = vmatpush1.msra.mxu0 0.0
    %551 = vmatprep.subr.mxu0 0.0
    %552 = vmatpush1.msra.mxu0 0.0
    %553 = vmatprep.subr.mxu0 0.0
    %554 = vmatpush1.msra.mxu0 0.0
    %555 = vmatprep.subr.mxu0 0.0
    %556 = vmatpush1.msra.mxu0 0.0
    %557 = vmatprep.subr.mxu0 0.0
    %558 = vmatpush1.msra.mxu0 0.0
    %559 = vmatprep.subr.mxu0 0.0
    %560 = vmatpush1.msra.mxu0 0.0
    %561 = vmatprep.subr.mxu0 0.0
    %562 = vmatpush1.msra.mxu0 0.0
    %563 = vmatprep.subr.mxu0 0.0
    %564 = vmatpush1.msra.mxu0 0.0
    %565 = vmatprep.subr.mxu0 0.0
    %566 = vmatpush1.msra.mxu0 0.0
    %567 = vmatprep.subr.mxu0 0.0
    %568 = vmatpush1.msra.mxu0 0.0
    %569 = vmatprep.subr.mxu0 0.0
    %570 = vmatpush1.msra.mxu0 0.0
    %571 = vmatprep.subr.mxu0 0.0
    %572 = vmatpush1.msra.mxu0 0.0
    %573 = vmatprep.subr.mxu0 0.0
    %574 = vmatpush1.msra.mxu0 0.0
    %575 = vmatprep.subr.mxu0 0.0
    %576 = vmatpush1.msra.mxu0 0.0
    %577 = vmatprep.subr.mxu0 0.0
    %578 = vmatpush1.msra.mxu0 0.0
    %579 = vmatprep.subr.mxu0 0.0
    %580 = vmatpush1.msra.mxu0 0.0
    %581 = vmatprep.subr.mxu0 0.0
    %582 = vmatpush1.msra.mxu0 0.0
    %583 = vmatprep.subr.mxu0 0.0
    %584 = vmatpush1.msra.mxu0 0.0
    %585 = vmatprep.subr.mxu0 0.0
    %586 = vmatpush1.msra.mxu0 0.0
    %587 = vmatprep.subr.mxu0 0.0
    %588 = vmatpush1.msra.mxu0 0.0
    %589 = vmatprep.subr.mxu0 0.0
    %590 = vmatpush1.msra.mxu0 0.0
    %591 = vmatprep.subr.mxu0 0.0
    %592 = vmatpush1.msra.mxu0 0.0
    %593 = vmatprep.subr.mxu0 0.0
    %594 = vmatpush1.msra.mxu0 0.0
    %595 = vmatprep.subr.mxu0 0.0
    %596 = vmatpush1.msra.mxu0 0.0
    %597 = vmatprep.subr.mxu0 0.0
    %598 = vmatpush1.msra.mxu0 0.0
    %599 = vmatprep.subr.mxu0 0.0
    %600 = vmatpush1.msra.mxu0 0.0
    %601 = vmatprep.subr.mxu0 0.0
    %602 = vmatpush1.msra.mxu0 0.0
    %603 = vmatprep.subr.mxu0 0.0
    %604 = vmatpush1.msra.mxu0 0.0
    %605 = vmatprep.mubr.f32.mxu0 0.0
    %606 = vmatmul.mubr.f32.gmra.mrb[0].mxu0 %v537
    %v607 = vpop.f32.mrb[0].mxu0
    %v608 = vadd.f32 %v536, %v607
    %v609 = vpop.f32.mrb[0].mxu0
    %610 = vmatprep.mubr.f32.mxu0 0.0
    %611 = vmatmul.mubr.f32.gmra.mrb[0].mxu0 %v539
    %v612 = vpop.f32.mrb[0].mxu0
    %v613 = vadd.f32 %v536, %v612
    %v614 = vpop.f32.mrb[0].mxu0
    %615 = vdwg.mxu0
    %v616 = vmax.f32 %v608, 0.0
    %v617 = vmax.f32 %v613, 0.0
    %v618 = vlaneseq
    %v619 = vshrl.u32 %v618, 7
    %v620 = vsub.s32 7, %v619
    %v621 = vrot.slane %v91, %v620
    %v622 = vmul.f32 %v616, %v621
    %v623 = vmul.f32 %v617, %v621
    %v624 = vsel %vm369, %v622, 0.0
    %625 = vadd.xlane.f32.xlu0 %v624
    %v626 = vpop.xlane.xlu0 %625
    %v627 = vsel %vm369, %v623, 0.0
    %628 = vadd.xlane.f32.xlu0 %v627
    %v629 = vpop.xlane.xlu0 %628
    %v630 = vadd.f32 %v626, %v536
    %v631 = vadd.f32 %v629, %v536
    %v632 = vsub.f32 0.0, %v630
    %v633 = vsub.f32 0.0, %v631
    %v634 = vsel %vm98, %v630, %v632
    %v635 = vsel %vm99, %v631, %v633
    %v636 = vmax.f32 %v634, 0.0
    %v637 = vmax.f32 %v635, 0.0
    %v638 = vsub.f32 0.0, %v634
    %v639 = vsub.f32 0.0, %v635
    %vm640 = vcmp.ne.f32.partialorder %v638, %v638
    %vm641 = vcmp.ne.f32.partialorder %v639, %v639
    %v642 = vadd.f32 %v634, 0.0
    %v643 = vadd.f32 %v635, 0.0
    %v644 = vand.u32 2147483647, %v638
    %v645 = vand.u32 2147483647, %v639
    %v646 = vsub.f32 0.0, %v644
    %v647 = vsub.f32 0.0, %v645
    %v648 = vmul.f32 %v646, 1.442695
    %v649 = vpow.pop %v648
    %v650 = vmul.f32 %v647, 1.442695
    %v651 = vpow.pop %v650
    %v652 = vadd.f32 %v649, 1.0
    %v653 = vlog2.pop %v652
    %v654 = vmul.f32 %v653, 0.6931472
    %v655 = vmul.f32 -0.5, %v649
    %v656 = vadd.f32 %v655, 1.0
    %v657 = vmul.f32 %v656, %v649
    %v658 = vand.u32 2147483647, %v649
    %vm659 = vcmp.lt.f32.partialorder %v658, 0.0004427343
    %v660 = vsel %vm659, %v657, %v654
    %v661 = vadd.f32 %v651, 1.0
    %v662 = vlog2.pop %v661
    %v663 = vmul.f32 %v662, 0.6931472
    %v664 = vmul.f32 -0.5, %v651
    %v665 = vadd.f32 %v664, 1.0
    %v666 = vmul.f32 %v665, %v651
    %v667 = vand.u32 2147483647, %v651
    %vm668 = vcmp.lt.f32.partialorder %v667, 0.0004427343
    %v669 = vsel %vm668, %v666, %v663
    %v670 = vadd.f32 %v636, %v660
    %v671 = vadd.f32 %v637, %v669
    %v672 = vsel %vm640, %v642, %v670
    %v673 = vsel %vm641, %v643, %v671
    %676 = vrot.lane.b32.xlu0 %v672, 112
    %v677 = vpop.permute.xlu0 %676
    %678 = vrot.lane.b32.xlu0 %v673, 112
    %v679 = vpop.permute.xlu0 %678
    %vm682 = vcmask 7168
    %v683 = vsel %vm682, %v677, 0.0
    %v684 = vsel %vm682, %v679, 0.0
    %v685 = vadd.f32 %v683, %v684
    %686 = vadd.xlane.f32.xlu0 %v685
    %v687 = vpop.xlane.xlu0 %686
    %v688 = vrot.slane %v687, 4
    %v689 = vadd.f32 %v687, %v688
    %v690 = vrot.slane %v689, 2
    %v691 = vadd.f32 %v689, %v690
    %v692 = vrot.slane %v691, 1
    %v693 = vadd.f32 %v691, %v692
    %s694 = vtos %v693
    %v695 = vstv %s694
    %v696 = vmul.f32 %v695, 0.125
    %v697 = vadd.f32 %v273, %v306
    %v698 = vadd.f32 %v278, %v307
    %v699 = vlaneseq
    %v700 = vshrl.u32 %v699, 7
    %v701 = vsub.s32 4, %v700
    %v702 = vrot.slane %v91, %v701
    %v704 = vsel %vm324, %v697, 0
    %706 = vmatprep.subr.mxu0 0.0
    %707 = vmatpush1.msra.mxu0 %v83
    %708 = vmatprep.subr.mxu0 0.0
    %709 = vmatpush1.msra.mxu0 %v84
    %710 = vmatprep.subr.mxu0 0.0
    %711 = vmatpush1.msra.mxu0 %v85
    %712 = vmatprep.subr.mxu0 0.0
    %713 = vmatpush1.msra.mxu0 %v86
    %714 = vmatprep.subr.mxu0 0.0
    %715 = vmatpush1.msra.mxu0 0.0
    %716 = vmatprep.subr.mxu0 0.0
    %717 = vmatpush1.msra.mxu0 0.0
    %718 = vmatprep.subr.mxu0 0.0
    %719 = vmatpush1.msra.mxu0 0.0
    %720 = vmatprep.subr.mxu0 0.0
    %721 = vmatpush1.msra.mxu0 0.0
    %722 = vmatprep.subr.mxu0 0.0
    %723 = vmatpush1.msra.mxu0 0.0
    %724 = vmatprep.subr.mxu0 0.0
    %725 = vmatpush1.msra.mxu0 0.0
    %726 = vmatprep.subr.mxu0 0.0
    %727 = vmatpush1.msra.mxu0 0.0
    %728 = vmatprep.subr.mxu0 0.0
    %729 = vmatpush1.msra.mxu0 0.0
    %730 = vmatprep.subr.mxu0 0.0
    %731 = vmatpush1.msra.mxu0 0.0
    %732 = vmatprep.subr.mxu0 0.0
    %733 = vmatpush1.msra.mxu0 0.0
    %734 = vmatprep.subr.mxu0 0.0
    %735 = vmatpush1.msra.mxu0 0.0
    %736 = vmatprep.subr.mxu0 0.0
    %737 = vmatpush1.msra.mxu0 0.0
    %738 = vmatprep.subr.mxu0 0.0
    %739 = vmatpush1.msra.mxu0 0.0
    %740 = vmatprep.subr.mxu0 0.0
    %741 = vmatpush1.msra.mxu0 0.0
    %742 = vmatprep.subr.mxu0 0.0
    %743 = vmatpush1.msra.mxu0 0.0
    %744 = vmatprep.subr.mxu0 0.0
    %745 = vmatpush1.msra.mxu0 0.0
    %746 = vmatprep.subr.mxu0 0.0
    %747 = vmatpush1.msra.mxu0 0.0
    %748 = vmatprep.subr.mxu0 0.0
    %749 = vmatpush1.msra.mxu0 0.0
    %750 = vmatprep.subr.mxu0 0.0
    %751 = vmatpush1.msra.mxu0 0.0
    %752 = vmatprep.subr.mxu0 0.0
    %753 = vmatpush1.msra.mxu0 0.0
    %754 = vmatprep.subr.mxu0 0.0
    %755 = vmatpush1.msra.mxu0 0.0
    %756 = vmatprep.subr.mxu0 0.0
    %757 = vmatpush1.msra.mxu0 0.0
    %758 = vmatprep.subr.mxu0 0.0
    %759 = vmatpush1.msra.mxu0 0.0
    %760 = vmatprep.subr.mxu0 0.0
    %761 = vmatpush1.msra.mxu0 0.0
    %762 = vmatprep.subr.mxu0 0.0
    %763 = vmatpush1.msra.mxu0 0.0
    %764 = vmatprep.subr.mxu0 0.0
    %765 = vmatpush1.msra.mxu0 0.0
    %766 = vmatprep.subr.mxu0 0.0
    %767 = vmatpush1.msra.mxu0 0.0
    %768 = vmatprep.subr.mxu0 0.0
    %769 = vmatpush1.msra.mxu0 0.0
    %770 = vmatprep.mubr.f32.mxu0 0.0
    %771 = vmatmul.mubr.f32.gmra.mrb[0].mxu0 %v704
    %v772 = vpop.f32.mrb[0].mxu0
    %v773 = vadd.f32 %v702, %v772
    %v774 = vpop.f32.mrb[0].mxu0
    %775 = vdwg.mxu0
    %v776 = vmax.f32 %v773, 0.0
    %v777 = vlaneseq
    %v778 = vshrl.u32 %v777, 7
    %v779 = vsub.s32 6, %v778
    %v780 = vrot.slane %v91, %v779
    %v781 = vmul.f32 %v776, %v780
    %v782 = vsel %vm324, %v781, 0.0
    %783 = vadd.xlane.f32.xlu0 %v782
    %v784 = vpop.xlane.xlu0 %783
    %v785 = vadd.f32 %v784, %v702
    %v786 = vld [vmem:[%s2] sm:$0xff]
    %788 = vrot.lane.b32.xlu0 %v785, 96
    %v789 = vpop.permute.xlu0 %788
    %v791 = vsub.f32 %v786, %v789
    %v792 = vmul.f32 %v791, %v791
    %v793 = vsel %vm682, %v792, 0.0
    %794 = vadd.xlane.f32.xlu0 %v793
    %v795 = vpop.xlane.xlu0 %794
    %v796 = vrot.slane %v795, 4
    %v797 = vadd.f32 %v795, %v796
    %v798 = vrot.slane %v797, 2
    %v799 = vadd.f32 %v797, %v798
    %v800 = vrot.slane %v799, 1
    %v801 = vadd.f32 %v799, %v800
    %s802 = vtos %v801
    %v803 = vstv %s802
    %v804 = vmul.f32 %v803, 0.125
    %v805 = vlaneseq
    %v806 = vshrl.u32 %v805, 7
    %v807 = vsub.s32 2, %v806
    %v808 = vrot.slane %v91, %v807
    %v810 = vsel %vm324, %v698, 0
    %812 = vmatprep.subr.mxu0 0.0
    %813 = vmatpush1.msra.mxu0 %v71
    %814 = vmatprep.subr.mxu0 0.0
    %815 = vmatpush1.msra.mxu0 %v72
    %816 = vmatprep.subr.mxu0 0.0
    %817 = vmatpush1.msra.mxu0 %v73
    %818 = vmatprep.subr.mxu0 0.0
    %819 = vmatpush1.msra.mxu0 %v74
    %820 = vmatprep.subr.mxu0 0.0
    %821 = vmatpush1.msra.mxu0 0.0
    %822 = vmatprep.subr.mxu0 0.0
    %823 = vmatpush1.msra.mxu0 0.0
    %824 = vmatprep.subr.mxu0 0.0
    %825 = vmatpush1.msra.mxu0 0.0
    %826 = vmatprep.subr.mxu0 0.0
    %827 = vmatpush1.msra.mxu0 0.0
    %828 = vmatprep.subr.mxu0 0.0
    %829 = vmatpush1.msra.mxu0 0.0
    %830 = vmatprep.subr.mxu0 0.0
    %831 = vmatpush1.msra.mxu0 0.0
    %832 = vmatprep.subr.mxu0 0.0
    %833 = vmatpush1.msra.mxu0 0.0
    %834 = vmatprep.subr.mxu0 0.0
    %835 = vmatpush1.msra.mxu0 0.0
    %836 = vmatprep.subr.mxu0 0.0
    %837 = vmatpush1.msra.mxu0 0.0
    %838 = vmatprep.subr.mxu0 0.0
    %839 = vmatpush1.msra.mxu0 0.0
    %840 = vmatprep.subr.mxu0 0.0
    %841 = vmatpush1.msra.mxu0 0.0
    %842 = vmatprep.subr.mxu0 0.0
    %843 = vmatpush1.msra.mxu0 0.0
    %844 = vmatprep.subr.mxu0 0.0
    %845 = vmatpush1.msra.mxu0 0.0
    %846 = vmatprep.subr.mxu0 0.0
    %847 = vmatpush1.msra.mxu0 0.0
    %848 = vmatprep.subr.mxu0 0.0
    %849 = vmatpush1.msra.mxu0 0.0
    %850 = vmatprep.subr.mxu0 0.0
    %851 = vmatpush1.msra.mxu0 0.0
    %852 = vmatprep.subr.mxu0 0.0
    %853 = vmatpush1.msra.mxu0 0.0
    %854 = vmatprep.subr.mxu0 0.0
    %855 = vmatpush1.msra.mxu0 0.0
    %856 = vmatprep.subr.mxu0 0.0
    %857 = vmatpush1.msra.mxu0 0.0
    %858 = vmatprep.subr.mxu0 0.0
    %859 = vmatpush1.msra.mxu0 0.0
    %860 = vmatprep.subr.mxu0 0.0
    %861 = vmatpush1.msra.mxu0 0.0
    %862 = vmatprep.subr.mxu0 0.0
    %863 = vmatpush1.msra.mxu0 0.0
    %864 = vmatprep.subr.mxu0 0.0
    %865 = vmatpush1.msra.mxu0 0.0
    %866 = vmatprep.subr.mxu0 0.0
    %867 = vmatpush1.msra.mxu0 0.0
    %868 = vmatprep.subr.mxu0 0.0
    %869 = vmatpush1.msra.mxu0 0.0
    %870 = vmatprep.subr.mxu0 0.0
    %871 = vmatpush1.msra.mxu0 0.0
    %872 = vmatprep.subr.mxu0 0.0
    %873 = vmatpush1.msra.mxu0 0.0
    %874 = vmatprep.subr.mxu0 0.0
    %875 = vmatpush1.msra.mxu0 0.0
    %876 = vmatprep.mubr.f32.mxu0 0.0
    %877 = vmatmul.mubr.f32.gmra.mrb[0].mxu0 %v704
    %v878 = vpop.f32.mrb[0].mxu0
    %v879 = vadd.f32 %v808, %v878
    %v880 = vpop.f32.mrb[0].mxu0
    %881 = vmatprep.mubr.f32.mxu0 0.0
    %882 = vmatmul.mubr.f32.gmra.mrb[0].mxu0 %v810
    %v883 = vpop.f32.mrb[0].mxu0
    %v884 = vadd.f32 %v808, %v883
    %v885 = vpop.f32.mrb[0].mxu0
    %886 = vdwg.mxu0
    %v887 = vmax.f32 %v879, 0.0
    %v888 = vmax.f32 %v884, 0.0
    %v889 = vlaneseq
    %v890 = vshrl.u32 %v889, 7
    %v891 = vsub.s32 3, %v890
    %v892 = vrot.slane %v91, %v891
    %v894 = vsel %vm108, %v887, 0
    %v897 = vsel %vm108, %v888, 0
    %899 = vmatprep.subr.mxu0 0.0
    %900 = vmatpush1.msra.mxu0 %v75
    %901 = vmatprep.subr.mxu0 0.0
    %902 = vmatpush1.msra.mxu0 %v76
    %903 = vmatprep.subr.mxu0 0.0
    %904 = vmatpush1.msra.mxu0 %v77
    %905 = vmatprep.subr.mxu0 0.0
    %906 = vmatpush1.msra.mxu0 %v78
    %907 = vmatprep.subr.mxu0 0.0
    %908 = vmatpush1.msra.mxu0 %v79
    %909 = vmatprep.subr.mxu0 0.0
    %910 = vmatpush1.msra.mxu0 %v80
    %911 = vmatprep.subr.mxu0 0.0
    %912 = vmatpush1.msra.mxu0 %v81
    %913 = vmatprep.subr.mxu0 0.0
    %914 = vmatpush1.msra.mxu0 %v82
    %915 = vmatprep.subr.mxu0 0.0
    %916 = vmatpush1.msra.mxu0 0.0
    %917 = vmatprep.subr.mxu0 0.0
    %918 = vmatpush1.msra.mxu0 0.0
    %919 = vmatprep.subr.mxu0 0.0
    %920 = vmatpush1.msra.mxu0 0.0
    %921 = vmatprep.subr.mxu0 0.0
    %922 = vmatpush1.msra.mxu0 0.0
    %923 = vmatprep.subr.mxu0 0.0
    %924 = vmatpush1.msra.mxu0 0.0
    %925 = vmatprep.subr.mxu0 0.0
    %926 = vmatpush1.msra.mxu0 0.0
    %927 = vmatprep.subr.mxu0 0.0
    %928 = vmatpush1.msra.mxu0 0.0
    %929 = vmatprep.subr.mxu0 0.0
    %930 = vmatpush1.msra.mxu0 0.0
    %931 = vmatprep.subr.mxu0 0.0
    %932 = vmatpush1.msra.mxu0 0.0
    %933 = vmatprep.subr.mxu0 0.0
    %934 = vmatpush1.msra.mxu0 0.0
    %935 = vmatprep.subr.mxu0 0.0
    %936 = vmatpush1.msra.mxu0 0.0
    %937 = vmatprep.subr.mxu0 0.0
    %938 = vmatpush1.msra.mxu0 0.0
    %939 = vmatprep.subr.mxu0 0.0
    %940 = vmatpush1.msra.mxu0 0.0
    %941 = vmatprep.subr.mxu0 0.0
    %942 = vmatpush1.msra.mxu0 0.0
    %943 = vmatprep.subr.mxu0 0.0
    %944 = vmatpush1.msra.mxu0 0.0
    %945 = vmatprep.subr.mxu0 0.0
    %946 = vmatpush1.msra.mxu0 0.0
    %947 = vmatprep.subr.mxu0 0.0
    %948 = vmatpush1.msra.mxu0 0.0
    %949 = vmatprep.subr.mxu0 0.0
    %950 = vmatpush1.msra.mxu0 0.0
    %951 = vmatprep.subr.mxu0 0.0
    %952 = vmatpush1.msra.mxu0 0.0
    %953 = vmatprep.subr.mxu0 0.0
    %954 = vmatpush1.msra.mxu0 0.0
    %955 = vmatprep.subr.mxu0 0.0
    %956 = vmatpush1.msra.mxu0 0.0
    %957 = vmatprep.subr.mxu0 0.0
    %958 = vmatpush1.msra.mxu0 0.0
    %959 = vmatprep.subr.mxu0 0.0
    %960 = vmatpush1.msra.mxu0 0.0
    %961 = vmatprep.subr.mxu0 0.0
    %962 = vmatpush1.msra.mxu0 0.0
    %963 = vmatprep.mubr.f32.mxu0 0.0
    %964 = vmatmul.mubr.f32.gmra.mrb[0].mxu0 %v894
    %v965 = vpop.f32.mrb[0].mxu0
    %v966 = vadd.f32 %v892, %v965
    %v967 = vpop.f32.mrb[0].mxu0
    %968 = vmatprep.mubr.f32.mxu0 0.0
    %969 = vmatmul.mubr.f32.gmra.mrb[0].mxu0 %v897
    %v970 = vpop.f32.mrb[0].mxu0
    %v971 = vadd.f32 %v892, %v970
    %v972 = vpop.f32.mrb[0].mxu0
    %973 = vdwg.mxu0
    %v974 = vmul.f32 %v93, %v93
    %v975 = vmul.f32 %v94, %v94
    %v976 = vsel %vm108, %v974, 0.0
    %977 = vadd.xlane.f32.xlu0 %v976
    %v978 = vpop.xlane.xlu0 %977
    %v979 = vsel %vm108, %v975, 0.0
    %980 = vadd.xlane.f32.xlu0 %v979
    %v981 = vpop.xlane.xlu0 %980
    %v982 = vadd.f32 %v978, 1e-12
    %v983 = vadd.f32 %v981, 1e-12
    %v984 = vrsqrt.pop %v982
    %v985 = vrsqrt.pop %v983
    %v986 = vmul.f32 %v93, %v984
    %v987 = vmul.f32 %v94, %v985
    %v988 = vmul.f32 %v966, %v966
    %v989 = vmul.f32 %v971, %v971
    %v990 = vsel %vm108, %v988, 0.0
    %991 = vadd.xlane.f32.xlu0 %v990
    %v992 = vpop.xlane.xlu0 %991
    %v993 = vsel %vm108, %v989, 0.0
    %994 = vadd.xlane.f32.xlu0 %v993
    %v995 = vpop.xlane.xlu0 %994
    %v996 = vadd.f32 %v992, 1e-12
    %v997 = vadd.f32 %v995, 1e-12
    %v998 = vrsqrt.pop %v996
    %v999 = vrsqrt.pop %v997
    %v1000 = vmul.f32 %v966, %v998
    %v1001 = vmul.f32 %v971, %v999
    %v1003 = vsel %vm108, %v986, 0
    %v1006 = vsel %vm108, %v987, 0
    %v1009 = vsel %vm108, %v1000, 0
    %v1012 = vsel %vm108, %v1001, 0
    %1014 = vmatprep.subr.mxu0 0.0
    %1015 = vmatpush1.xpose.msra.mxu0 %v1009
    %1016 = vmatprep.subr.mxu0 0.0
    %1017 = vmatpush1.xpose.msra.mxu0 %v1012
    %1018 = vmatprep.subr.mxu0 0.0
    %1019 = vmatpush1.xpose.msra.mxu0 0.0
    %1020 = vmatprep.subr.mxu0 0.0
    %1021 = vmatpush1.xpose.msra.mxu0 0.0
    %1022 = vmatprep.subr.mxu0 0.0
    %1023 = vmatpush1.xpose.msra.mxu0 0.0
    %1024 = vmatprep.subr.mxu0 0.0
    %1025 = vmatpush1.xpose.msra.mxu0 0.0
    %1026 = vmatprep.subr.mxu0 0.0
    %1027 = vmatpush1.xpose.msra.mxu0 0.0
    %1028 = vmatprep.subr.mxu0 0.0
    %1029 = vmatpush1.xpose.msra.mxu0 0.0
    %1030 = vmatprep.subr.mxu0 0.0
    %1031 = vmatpush1.xpose.msra.mxu0 0.0
    %1032 = vmatprep.subr.mxu0 0.0
    %1033 = vmatpush1.xpose.msra.mxu0 0.0
    %1034 = vmatprep.subr.mxu0 0.0
    %1035 = vmatpush1.xpose.msra.mxu0 0.0
    %1036 = vmatprep.subr.mxu0 0.0
    %1037 = vmatpush1.xpose.msra.mxu0 0.0
    %1038 = vmatprep.subr.mxu0 0.0
    %1039 = vmatpush1.xpose.msra.mxu0 0.0
    %1040 = vmatprep.subr.mxu0 0.0
    %1041 = vmatpush1.xpose.msra.mxu0 0.0
    %1042 = vmatprep.subr.mxu0 0.0
    %1043 = vmatpush1.xpose.msra.mxu0 0.0
    %1044 = vmatprep.subr.mxu0 0.0
    %1045 = vmatpush1.xpose.msra.mxu0 0.0
    %1046 = vmatprep.subr.mxu0 0.0
    %1047 = vmatpush1.xpose.msra.mxu0 0.0
    %1048 = vmatprep.subr.mxu0 0.0
    %1049 = vmatpush1.xpose.msra.mxu0 0.0
    %1050 = vmatprep.subr.mxu0 0.0
    %1051 = vmatpush1.xpose.msra.mxu0 0.0
    %1052 = vmatprep.subr.mxu0 0.0
    %1053 = vmatpush1.xpose.msra.mxu0 0.0
    %1054 = vmatprep.subr.mxu0 0.0
    %1055 = vmatpush1.xpose.msra.mxu0 0.0
    %1056 = vmatprep.subr.mxu0 0.0
    %1057 = vmatpush1.xpose.msra.mxu0 0.0
    %1058 = vmatprep.subr.mxu0 0.0
    %1059 = vmatpush1.xpose.msra.mxu0 0.0
    %1060 = vmatprep.subr.mxu0 0.0
    %1061 = vmatpush1.xpose.msra.mxu0 0.0
    %1062 = vmatprep.subr.mxu0 0.0
    %1063 = vmatpush1.xpose.msra.mxu0 0.0
    %1064 = vmatprep.subr.mxu0 0.0
    %1065 = vmatpush1.xpose.msra.mxu0 0.0
    %1066 = vmatprep.subr.mxu0 0.0
    %1067 = vmatpush1.xpose.msra.mxu0 0.0
    %1068 = vmatprep.subr.mxu0 0.0
    %1069 = vmatpush1.xpose.msra.mxu0 0.0
    %1070 = vmatprep.subr.mxu0 0.0
    %1071 = vmatpush1.xpose.msra.mxu0 0.0
    %1072 = vmatprep.subr.mxu0 0.0
    %1073 = vmatpush1.xpose.msra.mxu0 0.0
    %1074 = vmatprep.subr.mxu0 0.0
    %1075 = vmatpush1.xpose.msra.mxu0 0.0
    %1076 = vmatprep.subr.mxu0 0.0
    %1077 = vmatpush1.xpose.msra.mxu0 0.0
    %1078 = vmatprep.mubr.f32.mxu0 0.0
    %1079 = vmatmul.mubr.f32.gmra.mrb[0].mxu0 %v1003
    %v1080 = vpop.f32.mrb[0].mxu0
    %v1081 = vadd.f32 0.0, %v1080
    %v1082 = vpop.f32.mrb[0].mxu0
    %1083 = vmatprep.mubr.f32.mxu0 0.0
    %1084 = vmatmul.mubr.f32.gmra.mrb[0].mxu0 %v1006
    %v1085 = vpop.f32.mrb[0].mxu0
    %v1086 = vadd.f32 0.0, %v1085
    %v1087 = vpop.f32.mrb[0].mxu0
    %1088 = vdwg.mxu0
    %v1089 = vmul.f32 %v1081, 10.0
    %v1090 = vmul.f32 %v1086, 10.0
    %vm1091 = vcmp.lt.s32.totalorder %v282, 8
    %vm1092 = vmxor %vm98, %vm1091
    %vm1093 = vmxor %vm99, %vm1091
    %vm1094 = vmxor %vm1092, 1
    %vm1095 = vmxor %vm1093, 1
    %v1096 = vsel %vm1094, %v1089, -1e+30
    %v1097 = vsel %vm1095, %v1090, -1e+30
    %v1098 = vmul.f32 %v986, %v1000
    %v1099 = vmul.f32 %v987, %v1001
    %v1100 = vsel %vm108, %v1098, 0.0
    %1101 = vadd.xlane.f32.xlu0 %v1100
    %v1102 = vpop.xlane.xlu0 %1101
    %v1103 = vsel %vm108, %v1099, 0.0
    %1104 = vadd.xlane.f32.xlu0 %v1103
    %v1105 = vpop.xlane.xlu0 %1104
    %v1106 = vmul.f32 %v1102, 10.0
    %v1107 = vmul.f32 %v1105, 10.0
    %v1108 = vsel %vm369, %v1096, -inf
    %1109 = vmax.xlane.f32.xlu0 %v1108
    %v1110 = vpop.xlane.xlu0 %1109
    %v1111 = vsel %vm369, %v1097, -inf
    %1112 = vmax.xlane.f32.xlu0 %v1111
    %v1113 = vpop.xlane.xlu0 %1112
    %v1114 = vsub.f32 %v1096, %v1110
    %v1115 = vsub.f32 %v1097, %v1113
    %v1116 = vmul.f32 %v1114, 1.442695
    %v1117 = vpow.pop %v1116
    %v1118 = vmul.f32 %v1115, 1.442695
    %v1119 = vpow.pop %v1118
    %v1120 = vsel %vm369, %v1117, 0.0
    %1121 = vadd.xlane.f32.xlu0 %v1120
    %v1122 = vpop.xlane.xlu0 %1121
    %v1123 = vsel %vm369, %v1119, 0.0
    %1124 = vadd.xlane.f32.xlu0 %v1123
    %v1125 = vpop.xlane.xlu0 %1124
    %v1126 = vlog2.pop %v1122
    %v1127 = vmul.f32 %v1126, 0.6931472
    %v1128 = vlog2.pop %v1125
    %v1129 = vmul.f32 %v1128, 0.6931472
    %v1130 = vadd.f32 %v1110, %v1127
    %v1131 = vadd.f32 %v1113, %v1129
    %v1132 = vsub.f32 %v1130, %v1106
    %v1133 = vsub.f32 %v1131, %v1107
    %v1134 = vsel %vm682, %v1132, 0.0
    %v1135 = vsel %vm682, %v1133, 0.0
    %v1136 = vadd.f32 %v1134, %v1135
    %1137 = vadd.xlane.f32.xlu0 %v1136
    %v1138 = vpop.xlane.xlu0 %1137
    %v1139 = vrot.slane %v1138, 4
    %v1140 = vadd.f32 %v1138, %v1139
    %v1141 = vrot.slane %v1140, 2
    %v1142 = vadd.f32 %v1140, %v1141
    %v1143 = vrot.slane %v1142, 1
    %v1144 = vadd.f32 %v1142, %v1143
    %s1145 = vtos %v1144
    %v1146 = vstv %s1145
    %v1147 = vmul.f32 %v1146, 0.125
    %v1148 = vsel %vm682, %v532, %v696
    %vm1149 = vcmask 15360
    %v1150 = vsel %vm1149, %v1148, %v1147
    %vm1151 = vcmask 23552
    %v1152 = vsel %vm1151, %v1150, %v804
    %vm1153 = vcmask 24576
    %1154 = vst.msk [vmem:[%s4] sm:$0x1] %vm1153, %v1152
    // Predicated region
    $region22: #{transfernet_forward.1} parent=1 // pred_check
      _
    $region23: #{transfernet_forward.1} parent=1 // pred_check_branch
      %1156 = sbr.rel (0) target = $region25
    $region24: #{transfernet_forward.1} parent=1 // pred_region
      _
    $region25: #{transfernet_forward.1} parent=1 // pred_fallthru
      _
    // Predicated region
    $region26: #{transfernet_forward.1} parent=1 // pred_check
      _
    $region27: #{transfernet_forward.1} parent=1 // pred_check_branch
      %1158 = sbr.rel (0) target = $region29
    $region28: #{transfernet_forward.1} parent=1 // pred_region
      _
    $region29: #{transfernet_forward.1} parent=1 // pred_fallthru
      _
    %1159 = vsyncpa [#allocation3], 1

</llo_original>
